<compile_context>
chip_gen: v6e
topology: v6e:2x2x1
jax: 0.10.0
libtpu: 0.0.40
codegen_flags: <defaults>
</compile_context>

<pallas_src>
import functools
import math

import jax
import jax.numpy as jnp
from jax import lax
from jax.experimental import pallas as pl
from jax.experimental.pallas import tpu as pltpu


NEG_INF = -1e30          # large finite negative: every causal row has >=1
                         # valid key, so this matches -inf masking, NaN-proof.
_DEFAULT_VMEM_BYTES = 64 * 1024 * 1024   # v7x per-TC capacity (smallest gen)


# ---------------------------------------------------------------------------
# Hardware-aware VMEM budgeting & single-buffer probing.
# ---------------------------------------------------------------------------
def _vmem_capacity_bytes():
    try:
        info = pltpu.get_tpu_info()
        cap = getattr(info, "vmem_capacity_bytes", None)
        if cap:
            return int(cap)
    except Exception:
        pass
    return _DEFAULT_VMEM_BYTES


@functools.lru_cache(maxsize=None)
def _single_buffer_supported():
    """Probe whether BlockSpec(pipeline_mode=pl.Buffered(1)) lowers and runs.

    Single-buffering grid-constant operands halves their VMEM footprint (the
    difference between fitting and OOM for large d_model on v7x's 64 MiB)."""
    try:
        spec = pl.BlockSpec((8, 128), lambda i: (0, 0),
                            pipeline_mode=pl.Buffered(1))
    except Exception:
        return False

    def _probe(x_ref, o_ref):
        o_ref[...] = x_ref[...] + 1.0

    try:
        fn = pl.pallas_call(
            _probe,
            out_shape=jax.ShapeDtypeStruct((16, 128), jnp.float32),
            grid=(2,),
            in_specs=[spec],
            out_specs=pl.BlockSpec((8, 128), lambda i: (i, 0)))
        jax.block_until_ready(fn(jnp.zeros((8, 128), jnp.float32)))
        return True
    except Exception:
        return False


def _const_spec(block_shape, index_map):
    """BlockSpec for operands whose index_map is grid-constant (weights)."""
    if _single_buffer_supported():
        return pl.BlockSpec(block_shape, index_map,
                            pipeline_mode=pl.Buffered(1))
    return pl.BlockSpec(block_shape, index_map)


def _pad(x, m):
    return ((x + m - 1) // m) * m


def _flash_vmem_bytes(t, h, d_k, d, w_bufs):
    """Rough VMEM footprint of the attention kernel at seq tile t, padded to
    the (sublane, 128-lane) layout so lane padding of d_k < 128 is counted."""
    bf16, f32 = 2, 4
    pdk, pd = _pad(d_k, 128), _pad(d, 128)
    qkv = 3 * 2 * h * _pad(t, 16) * pdk * bf16            # double-buffered tiles
    out = 2 * _pad(t, 8) * pd * f32                       # double-buffered out
    wo = w_bufs * _pad(d, 8) * pd * bf16                  # output projection
    acc = h * _pad(t, 8) * pdk * f32                      # scratch accumulator
    ml = 2 * _pad(h, 8) * _pad(t, 128) * f32              # running max / denom
    heads = _pad(t, 16) * pd * bf16                       # combined-heads scratch
    scores = h * _pad(t, 8) * _pad(t, 128) * (2 * f32 + bf16)   # live s, p
    return qkv + out + wo + acc + ml + heads + scores


def _qkv_vmem_bytes(t, h, d_k, d, w_bufs):
    bf16, f32 = 2, 4
    pdk, pd = _pad(d_k, 128), _pad(d, 128)
    x = 2 * _pad(t, 16) * pd * bf16
    w = w_bufs * _pad(d, 8) * _pad(3 * d, 128) * bf16     # fused QKV weight
    cs = 2 * 2 * _pad(t, 8) * _pad(d // 2, 128) * f32     # cos/sin tiles
    y = _pad(t, 8) * _pad(3 * d, 128) * f32               # projection result
    outs = 3 * 2 * h * _pad(t, 16) * pdk * bf16
    return x + w + cs + y + outs


def _choose_seq_tile(S, h, d_k, d, budget, w_bufs):
    cands = [c for c in (1024, 512, 256, 128, 64, 32, 16, 8)
             if c < S and S % c == 0]
    if S <= 1024:
        cands = [S] + cands
    for t in cands:
        if max(_flash_vmem_bytes(t, h, d_k, d, w_bufs),
               _qkv_vmem_bytes(t, h, d_k, d, w_bufs)) <= budget:
            return t
    return cands[-1] if cands else S


# ---------------------------------------------------------------------------
# Kernel 1: fused QKV projection (one (D, 3D) matmul) + vectorized RoPE.
# ---------------------------------------------------------------------------
def _qkv_rope_kernel(x_ref, w_ref, cos_ref, sin_ref, q_ref, k_ref, v_ref):
    # x tile: (t, D) bf16.  w: (D, 3D) bf16, columns [Wq | Wk | Wv] with Wq/Wk
    # columns globally permuted to (all even halves | all odd halves) across
    # heads and Wq pre-scaled by 1/sqrt(d_k).  One MXU matmul replaces three.
    x = x_ref[0]
    y = jnp.dot(x, w_ref[...], preferred_element_type=jnp.float32)   # (t, 3D)

    num_heads, d_k = q_ref.shape[1], q_ref.shape[3]
    dk2 = d_k // 2
    d_model = x.shape[-1]
    half = num_heads * dk2                     # = d_model // 2
    out_dtype = q_ref.dtype

    q = y[:, :d_model]
    k = y[:, d_model:2 * d_model]
    v = y[:, 2 * d_model:]

    cos = cos_ref[...]                         # (t, D/2) f32, head-tiled
    sin = sin_ref[...]

    # RoPE vectorized over all heads: four full-width VPU multiply/adds,
    # no per-head concatenate / relayout copies.
    q1, q2 = q[:, :half], q[:, half:]
    k1, k2 = k[:, :half], k[:, half:]
    rq1 = q1 * cos - q2 * sin
    rq2 = q2 * cos + q1 * sin
    rk1 = k1 * cos - k2 * sin
    rk2 = k2 * cos + k1 * sin

    # Per-head stores into the (B, H, S, d_k) rotate-half layout consumed by
    # the attention kernel (Q and K share the layout so scores are unchanged;
    # V and the output projection stay in the natural feature order).
    # TODO(synk): for d_k < 128 these are masked-lane stores; packing two
    # heads per 128-lane group would make them dense.
    for h in range(num_heads):
        sl = slice(h * dk2, (h + 1) * dk2)
        q_ref[0, h, :, :dk2] = rq1[:, sl].astype(out_dtype)
        q_ref[0, h, :, dk2:] = rq2[:, sl].astype(out_dtype)
        k_ref[0, h, :, :dk2] = rk1[:, sl].astype(out_dtype)
        k_ref[0, h, :, dk2:] = rk2[:, sl].astype(out_dtype)
        v_ref[0, h] = v[:, h * d_k:(h + 1) * d_k].astype(out_dtype)


# ---------------------------------------------------------------------------
# Kernel 2: flash attention (online softmax) + fused output projection.
# Grid: (B, n_tri) where n_tri enumerates only the lower-triangle (qi, ki)
# block pairs via scalar-prefetched SMEM tables -> fully-masked blocks never
# execute (vs. empty grid steps in a rectangular (B, n_q, n_kv) grid).
# ---------------------------------------------------------------------------
def _flash_attn_kernel(qi_tab_ref, ki_tab_ref, q_ref, k_ref, v_ref, wo_ref,
                       o_ref, m_sc, l_sc, acc_sc, heads_sc):
    step = pl.program_id(1)
    qi = qi_tab_ref[step]
    ki = ki_tab_ref[step]
    num_heads, t, d_k = acc_sc.shape

    @pl.when(ki == 0)
    def _init():
        m_sc[...] = jnp.full(m_sc.shape, NEG_INF, dtype=jnp.float32)
        l_sc[...] = jnp.zeros(l_sc.shape, dtype=jnp.float32)
        acc_sc[...] = jnp.zeros(acc_sc.shape, dtype=jnp.float32)

    def _scores():
        # All heads in one batched MXU pass; contraction on d_k, no transpose.
        return jnp.einsum('hqd,hkd->hqk', q_ref[0], k_ref[0],
                          preferred_element_type=jnp.float32)

    def _update(s):
        m_prev = m_sc[...]                                       # (H, t)
        m_new = jnp.maximum(m_prev, jnp.max(s, axis=-1))
        alpha = jnp.exp(m_prev - m_new)
        # TODO(synk): on v6e/v7x with d_k <= 128 this exp is the binding EUP
        # slot; computing it on a bf16 argument (~2x EUP rate) is a further
        # win there.  Skipped to stay v5e-safe and keep accuracy tight.
        p = jnp.exp(s - m_new[..., None])
        l_sc[...] = alpha * l_sc[...] + jnp.sum(p, axis=-1)
        acc_sc[...] = alpha[..., None] * acc_sc[...] + jnp.einsum(
            'hqk,hkd->hqd', p.astype(v_ref.dtype), v_ref[0],
            preferred_element_type=jnp.float32)
        m_sc[...] = m_new

    # Strictly-below-diagonal KV block: fully visible, no mask built at all.
    @pl.when(ki < qi)
    def _full_block():
        _update(_scores())

    # Diagonal block (always the last step for this q block in the triangle
    # ordering): the only place the causal iota mask is built, then finalize.
    @pl.when(ki == qi)
    def _diag_and_finalize():
        s = _scores()
        row = lax.broadcasted_iota(jnp.int32, (t, t), 0)
        col = lax.broadcasted_iota(jnp.int32, (t, t), 1)
        s = jnp.where((col <= row)[None], s, NEG_INF)
        _update(s)

        # Finalize: EUP reciprocal, assemble the combined heads once in a
        # (t, D) bf16 scratch, then a single K=D MXU matmul against Wo and a
        # single lane-dense store of the output tile.
        inv_l = pl.reciprocal(l_sc[...], approx=True)            # (H, t)
        heads = (acc_sc[...] * inv_l[..., None]).astype(heads_sc.dtype)
        for h in range(num_heads):
            heads_sc[:, h * d_k:(h + 1) * d_k] = heads[h]
        o_ref[0] = jnp.dot(heads_sc[...], wo_ref[...],
                           preferred_element_type=jnp.float32
                           ).astype(o_ref.dtype)


# ---------------------------------------------------------------------------
# Wrapper.
# ---------------------------------------------------------------------------
def causal_mha(x, wq, wk, wv, wo, num_heads, theta, seq_block=None):
    """Forward pass of CausalMultiheadAttention.  Weights are (d_out, d_in)."""
    B, S, D = x.shape
    assert D % num_heads == 0
    d_k = D // num_heads
    assert d_k % 2 == 0
    dk2 = d_k // 2

    # Generation-aware VMEM budget (v5e/v6e: 128 MiB, v7x: 64 MiB per core).
    vmem_cap = _vmem_capacity_bytes()
    vmem_limit = min(int(vmem_cap * 0.75), 112 * 1024 * 1024)
    tile_budget = int(vmem_cap * 0.55)
    w_bufs = 1 if _single_buffer_supported() else 2

    t = (seq_block if seq_block is not None
         else _choose_seq_tile(S, num_heads, d_k, D, tile_budget, w_bufs))
    assert S % t == 0 and (t % 8 == 0 or t == S)
    n_blocks = S // t

    # RoPE tables, head-tiled to (S, D//2) f32 so the in-kernel rotation is
    # four full-width VPU FMAs.
    pos = jnp.arange(S, dtype=jnp.float32)
    inv_freq = theta ** (-2.0 * jnp.arange(dk2, dtype=jnp.float32) / d_k)
    ang = pos[:, None] * inv_freq[None, :]
    cos_t = jnp.tile(jnp.cos(ang), (1, num_heads))
    sin_t = jnp.tile(jnp.sin(ang), (1, num_heads))

    # Global Q/K output-column permutation: per head even-index features
    # first, odd second, all even halves ahead of all odd halves.  Applied
    # identically to Wq and Wk it leaves attention scores unchanged while
    # turning interleaved RoPE into contiguous half-splits.
    even_cols = (jnp.arange(num_heads)[:, None] * d_k
                 + 2 * jnp.arange(dk2)[None, :]).reshape(-1)
    perm = jnp.concatenate([even_cols, even_cols + 1])

    compute_dtype = jnp.bfloat16               # bf16 MXU inputs, f32 accumulate
    scale = 1.0 / math.sqrt(d_k)
    wq_c = (wq.T * scale)[:, perm]             # 1/sqrt(d_k) folded into Wq
    wk_c = wk.T[:, perm]
    # Fused (D, 3D) weight: one MXU matmul (N = 3D) instead of three.
    # TODO(synk): for production d_model (>= ~2K) the (D, 3D) weight and Wo
    # should additionally be tiled along their output dim (extra grid axis)
    # to bound VMEM; untiled here for simplicity at small D.
    w_qkv = jnp.concatenate([wq_c, wk_c, wv.T], axis=1).astype(compute_dtype)
    wo_c = wo.T.astype(compute_dtype)
    x_lp = x.astype(compute_dtype)

    # ---- Kernel 1: fused QKV projection + RoPE -> (B, H, S, d_k) bf16 ----
    qkv_shape = jax.ShapeDtypeStruct((B, num_heads, S, d_k), compute_dtype)
    head_spec = pl.BlockSpec((1, num_heads, t, d_k), lambda b, i: (b, 0, i, 0))
    q_r, k_r, v_r = pl.pallas_call(
        _qkv_rope_kernel,
        out_shape=(qkv_shape, qkv_shape, qkv_shape),
        grid=(B, n_blocks),
        in_specs=[
            pl.BlockSpec((1, t, D), lambda b, i: (b, i, 0)),      # x tile
            _const_spec((D, 3 * D), lambda b, i: (0, 0)),         # fused QKV W
            pl.BlockSpec((t, D // 2), lambda b, i: (i, 0)),       # cos
            pl.BlockSpec((t, D // 2), lambda b, i: (i, 0)),       # sin
        ],
        out_specs=(head_spec, head_spec, head_spec),
        compiler_params=pltpu.CompilerParams(
            dimension_semantics=("parallel", "parallel"),
            vmem_limit_bytes=vmem_limit),
    )(x_lp, w_qkv, cos_t, sin_t)

    # ---- Kernel 2: flash attention + fused output projection ----
    # Flattened lower-triangle grid: scalar-prefetched tables map the flat
    # step index to (q block, kv block); above-diagonal blocks never run.
    qi_list, ki_list = [], []
    for qi in range(n_blocks):
        for ki in range(qi + 1):
            qi_list.append(qi)
            ki_list.append(ki)
    qi_tab = jnp.asarray(qi_list, dtype=jnp.int32)
    ki_tab = jnp.asarray(ki_list, dtype=jnp.int32)
    n_tri = len(qi_list)

    grid_spec = pltpu.PrefetchScalarGridSpec(
        num_scalar_prefetch=2,
        grid=(B, n_tri),
        in_specs=[
            pl.BlockSpec((1, num_heads, t, d_k),
                         lambda b, s, qt, kt: (b, 0, qt[s], 0)),   # q
            pl.BlockSpec((1, num_heads, t, d_k),
                         lambda b, s, qt, kt: (b, 0, kt[s], 0)),   # k
            pl.BlockSpec((1, num_heads, t, d_k),
                         lambda b, s, qt, kt: (b, 0, kt[s], 0)),   # v
            _const_spec((D, D), lambda b, s, qt, kt: (0, 0)),      # Wo^T
        ],
        out_specs=pl.BlockSpec((1, t, D), lambda b, s, qt, kt: (b, qt[s], 0)),
        scratch_shapes=[
            pltpu.VMEM((num_heads, t), jnp.float32),        # running max
            pltpu.VMEM((num_heads, t), jnp.float32),        # running denom
            pltpu.VMEM((num_heads, t, d_k), jnp.float32),   # per-head accum
            pltpu.VMEM((t, D), compute_dtype),              # combined heads
        ])

    # TODO(synk): if downstream accepts bf16 activations, emit the output in
    # bf16 to halve HBM writeback; kept f32 here to match the module dtype.
    out = pl.pallas_call(
        _flash_attn_kernel,
        out_shape=jax.ShapeDtypeStruct((B, S, D), jnp.float32),
        grid_spec=grid_spec,
        compiler_params=pltpu.CompilerParams(
            dimension_semantics=("parallel", "arbitrary"),
            vmem_limit_bytes=vmem_limit),
    )(qi_tab, ki_tab, q_r, k_r, v_r, wo_c)
    return out


# ---------------------------------------------------------------------------
# Pure-JAX f32 reference (mirror of the PyTorch module) for verification.
# ---------------------------------------------------------------------------
def reference_mha(x, wq, wk, wv, wo, num_heads, theta):
    B, S, D = x.shape
    d_k = D // num_heads
    Q, K, V = x @ wq.T, x @ wk.T, x @ wv.T

    def split(t):  # '... seq (h d_k) -> h ... seq d_k'
        return t.reshape(B, S, num_heads, d_k).transpose(2, 0, 1, 3)

    q, k, v = split(Q), split(K), split(V)

    pos_k = jnp.arange(d_k // 2, dtype=jnp.float32)
    pos_i = jnp.arange(S, dtype=jnp.float32)
    theta_k = theta ** (-2.0 * pos_k / d_k)
    ang = pos_i[:, None] * theta_k[None, :]
    sin, cos = jnp.sin(ang), jnp.cos(ang)

    def rope(t):
        x1, x2 = t[..., 0::2], t[..., 1::2]
        r1 = x1 * cos - x2 * sin
        r2 = x1 * sin + x2 * cos
        return jnp.stack([r1, r2], axis=-1).reshape(t.shape)

    q, k = rope(q), rope(k)
    scores = jnp.einsum('hbqd,hbkd->hbqk', q, k) / math.sqrt(d_k)
    mask = jnp.tril(jnp.ones((S, S), dtype=bool))
    scores = jnp.where(mask, scores, -jnp.inf)
    probs = jax.nn.softmax(scores, axis=-1)
    heads = jnp.einsum('hbqk,hbkd->hbqd', probs, v)
    comb = heads.transpose(1, 2, 0, 3).reshape(B, S, D)
    return comb @ wo.T


if __name__ == "__main__":
    def _run_case(B, S, D, H, theta=10000.0, seq_block=None):
        key = jax.random.PRNGKey(0)
        kx, kq, kk, kv, ko = jax.random.split(key, 5)

        # Xavier trunc-normal init (std = sqrt(2/(d_in+d_out)), cut at +-3 std).
        std = math.sqrt(2.0 / (D + D))
        init_w = lambda k: std * jax.random.truncated_normal(
            k, -3.0, 3.0, (D, D), jnp.float32)
        wq, wk, wv, wo = init_w(kq), init_w(kk), init_w(kv), init_w(ko)
        x = jax.random.normal(kx, (B, S, D), dtype=jnp.float32)

        out = causal_mha(x, wq, wk, wv, wo, num_heads=H, theta=theta,
                         seq_block=seq_block)
        out = jax.block_until_ready(out)
        ref = reference_mha(x, wq, wk, wv, wo, num_heads=H, theta=theta)

        assert out.shape == (B, S, D)
        max_err = float(jnp.max(jnp.abs(out - ref)))
        rel_fro = float(jnp.linalg.norm(out - ref) / jnp.linalg.norm(ref))
        # bf16 MXU inputs with f32 accumulation vs. a pure-f32 reference.
        assert jnp.allclose(out, ref, atol=5e-2, rtol=5e-2), (
            f"mismatch (B={B},S={S},D={D},H={H},t={seq_block}): "
            f"max abs err {max_err}")
        assert rel_fro < 3e-2, (
            f"relative Frobenius error {rel_fro} "
            f"(B={B},S={S},D={D},H={H},t={seq_block})")

    # Multi-block case: exercises the flattened-triangle grid, the unmasked
    # below-diagonal branch, the masked diagonal branch and the multi-step
    # pipeline (S=32, seq tile 8 -> 4 q blocks, 10 triangle steps).
    _run_case(B=2, S=32, D=32, H=4, seq_block=8)
    # Single-block case with a lane-sized head dim (d_k=64) and auto tiling.
    _run_case(B=1, S=16, D=128, H=2)

    print("KERNEL_OK")
</pallas_src>

<mosaic_0001>
module attributes {stable_mosaic.version = 11 : i64} {
  func.func @_probe(%arg0: i32, %arg1: memref<8x128xf32, #tpu.memory_space<vmem>>, %arg2: memref<8x128xf32, #tpu.memory_space<vmem>>) attributes {dimension_semantics = [#tpu.dimension_semantics<arbitrary>], iteration_bounds = array<i64: 2>, scalar_prefetch = 0 : i64, scratch_operands = 0 : i64, tpu.core_type = #tpu.core_type<tc>, window_params = [{pipeline_mode = #tpu.pipeline_mode<synchronous>, transform_indices = @transform_0, window_bounds = array<i64: 8, 128>}, {transform_indices = @transform_1, window_bounds = array<i64: 8, 128>}]} {
    %c0 = arith.constant 0 : index
    %c0_0 = arith.constant 0 : index
    %0 = vector.load %arg1[%c0, %c0_0] : memref<8x128xf32, #tpu.memory_space<vmem>>, vector<8x128xf32>
    %cst = arith.constant 1.000000e+00 : f32
    %1 = vector.broadcast %cst : f32 to vector<8x128xf32>
    %2 = arith.addf %0, %1 : vector<8x128xf32>
    %c0_1 = arith.constant 0 : index
    %c0_2 = arith.constant 0 : index
    %3 = vector.load %arg2[%c0_1, %c0_2] : memref<8x128xf32, #tpu.memory_space<vmem>>, vector<8x128xf32>
    tpu.vector_store %arg2[%c0_1, %c0_2], %2 {strides = array<i32>} : memref<8x128xf32, #tpu.memory_space<vmem>>, vector<8x128xf32>,
    return
  }
  func.func @transform_0(%arg0: i32) -> (i32, i32) {
    %c0_i32 = arith.constant 0 : i32
    %c0_i32_0 = arith.constant 0 : i32
    %c0_i32_1 = arith.constant 0 : i32
    return %c0_i32, %c0_i32_0 : i32, i32
  }
  func.func @transform_1(%arg0: i32) -> (i32, i32) {
    %c0_i32 = arith.constant 0 : i32
    %c0_i32_0 = arith.constant 0 : i32
    return %arg0, %c0_i32 : i32, i32
  }
}

module attributes {stable_mosaic.version = 11 : i64} {
  func.func @_qkv_rope_kernel(%arg0: i32, %arg1: i32, %arg2: memref<1x8x32xbf16, #tpu.memory_space<vmem>>, %arg3: memref<32x96xbf16, #tpu.memory_space<vmem>>, %arg4: memref<8x16xf32, #tpu.memory_space<vmem>>, %arg5: memref<8x16xf32, #tpu.memory_space<vmem>>, %arg6: memref<1x4x8x8xbf16, #tpu.memory_space<vmem>>, %arg7: memref<1x4x8x8xbf16, #tpu.memory_space<vmem>>, %arg8: memref<1x4x8x8xbf16, #tpu.memory_space<vmem>>) attributes {dimension_semantics = [#tpu.dimension_semantics<parallel>, #tpu.dimension_semantics<parallel>], iteration_bounds = array<i64: 2, 4>, scalar_prefetch = 0 : i64, scratch_operands = 0 : i64, tpu.core_type = #tpu.core_type<tc>, window_params = [{transform_indices = @transform_0, window_bounds = array<i64: 1, 8, 32>}, {pipeline_mode = #tpu.pipeline_mode<synchronous>, transform_indices = @transform_1, window_bounds = array<i64: 32, 96>}, {transform_indices = @transform_2, window_bounds = array<i64: 8, 16>}, {transform_indices = @transform_3, window_bounds = array<i64: 8, 16>}, {transform_indices = @transform_4, window_bounds = array<i64: 1, 4, 8, 8>}, {transform_indices = @transform_5, window_bounds = array<i64: 1, 4, 8, 8>}, {transform_indices = @transform_6, window_bounds = array<i64: 1, 4, 8, 8>}]} {
    %c0 = arith.constant 0 : index
    %c0_0 = arith.constant 0 : index
    %c0_1 = arith.constant 0 : index
    %0 = vector.load %arg2[%c0, %c0_0, %c0_1] : memref<1x8x32xbf16, #tpu.memory_space<vmem>>, vector<1x8x32xbf16>
    %1 = vector.shape_cast %0 : vector<1x8x32xbf16> to vector<8x32xbf16>
    %c0_2 = arith.constant 0 : index
    %c0_3 = arith.constant 0 : index
    %2 = vector.load %arg3[%c0_2, %c0_3] : memref<32x96xbf16, #tpu.memory_space<vmem>>, vector<32x96xbf16>
    %cst = arith.constant dense<0.000000e+00> : vector<8x96xf32>
    %3 = tpu.matmul %1, %2, %cst {dimension_numbers = #tpu.dot_dimension_numbers<[1], [0], [0], [1], [0, 0, 1, 1], [], []>} : vector<8x32xbf16>, vector<32x96xbf16>, vector<8x96xf32> -> vector<8x96xf32>
    %4 = vector.extract_strided_slice %3 {offsets = [0, 0], sizes = [8, 32], strides = [1, 1]} : vector<8x96xf32> to vector<8x32xf32>
    %5 = vector.extract_strided_slice %3 {offsets = [0, 32], sizes = [8, 32], strides = [1, 1]} : vector<8x96xf32> to vector<8x32xf32>
    %6 = vector.extract_strided_slice %3 {offsets = [0, 64], sizes = [8, 32], strides = [1, 1]} : vector<8x96xf32> to vector<8x32xf32>
    %c0_4 = arith.constant 0 : index
    %c0_5 = arith.constant 0 : index
    %7 = vector.load %arg4[%c0_4, %c0_5] : memref<8x16xf32, #tpu.memory_space<vmem>>, vector<8x16xf32>
    %c0_6 = arith.constant 0 : index
    %c0_7 = arith.constant 0 : index
    %8 = vector.load %arg5[%c0_6, %c0_7] : memref<8x16xf32, #tpu.memory_space<vmem>>, vector<8x16xf32>
    %9 = vector.extract_strided_slice %4 {offsets = [0, 0], sizes = [8, 16], strides = [1, 1]} : vector<8x32xf32> to vector<8x16xf32>
    %10 = vector.extract_strided_slice %4 {offsets = [0, 16], sizes = [8, 16], strides = [1, 1]} : vector<8x32xf32> to vector<8x16xf32>
    %11 = vector.extract_strided_slice %5 {offsets = [0, 0], sizes = [8, 16], strides = [1, 1]} : vector<8x32xf32> to vector<8x16xf32>
    %12 = vector.extract_strided_slice %5 {offsets = [0, 16], sizes = [8, 16], strides = [1, 1]} : vector<8x32xf32> to vector<8x16xf32>
    %13 = arith.mulf %9, %7 : vector<8x16xf32>
    %14 = arith.mulf %10, %8 : vector<8x16xf32>
    %15 = arith.subf %13, %14 : vector<8x16xf32>
    %16 = arith.mulf %10, %7 : vector<8x16xf32>
    %17 = arith.mulf %9, %8 : vector<8x16xf32>
    %18 = arith.addf %16, %17 : vector<8x16xf32>
    %19 = arith.mulf %11, %7 : vector<8x16xf32>
    %20 = arith.mulf %12, %8 : vector<8x16xf32>
    %21 = arith.subf %19, %20 : vector<8x16xf32>
    %22 = arith.mulf %12, %7 : vector<8x16xf32>
    %23 = arith.mulf %11, %8 : vector<8x16xf32>
    %24 = arith.addf %22, %23 : vector<8x16xf32>
    %25 = vector.extract_strided_slice %15 {offsets = [0, 0], sizes = [8, 4], strides = [1, 1]} : vector<8x16xf32> to vector<8x4xf32>
    %26 = arith.truncf %25 : vector<8x4xf32> to vector<8x4xbf16>
    %c0_8 = arith.constant 0 : index
    %c0_9 = arith.constant 0 : index
    %c0_10 = arith.constant 0 : index
    %c0_11 = arith.constant 0 : index
    %27 = vector.load %arg6[%c0_8, %c0_9, %c0_10, %c0_11] : memref<1x4x8x8xbf16, #tpu.memory_space<vmem>>, vector<1x1x8x4xbf16>
    %28 = vector.shape_cast %27 : vector<1x1x8x4xbf16> to vector<8x4xbf16>
    %29 = vector.shape_cast %26 : vector<8x4xbf16> to vector<1x1x8x4xbf16>
    tpu.vector_store %arg6[%c0_8, %c0_9, %c0_10, %c0_11], %29 {strides = array<i32>} : memref<1x4x8x8xbf16, #tpu.memory_space<vmem>>, vector<1x1x8x4xbf16>,
    %30 = vector.extract_strided_slice %18 {offsets = [0, 0], sizes = [8, 4], strides = [1, 1]} : vector<8x16xf32> to vector<8x4xf32>
    %31 = arith.truncf %30 : vector<8x4xf32> to vector<8x4xbf16>
    %c0_12 = arith.constant 0 : index
    %c0_13 = arith.constant 0 : index
    %c0_14 = arith.constant 0 : index
    %c4 = arith.constant 4 : index
    %32 = vector.load %arg6[%c0_12, %c0_13, %c0_14, %c4] : memref<1x4x8x8xbf16, #tpu.memory_space<vmem>>, vector<1x1x8x4xbf16>
    %33 = vector.shape_cast %32 : vector<1x1x8x4xbf16> to vector<8x4xbf16>
    %34 = vector.shape_cast %31 : vector<8x4xbf16> to vector<1x1x8x4xbf16>
    tpu.vector_store %arg6[%c0_12, %c0_13, %c0_14, %c4], %34 {strides = array<i32>} : memref<1x4x8x8xbf16, #tpu.memory_space<vmem>>, vector<1x1x8x4xbf16>,
    %35 = vector.extract_strided_slice %21 {offsets = [0, 0], sizes = [8, 4], strides = [1, 1]} : vector<8x16xf32> to vector<8x4xf32>
    %36 = arith.truncf %35 : vector<8x4xf32> to vector<8x4xbf16>
    %c0_15 = arith.constant 0 : index
    %c0_16 = arith.constant 0 : index
    %c0_17 = arith.constant 0 : index
    %c0_18 = arith.constant 0 : index
    %37 = vector.load %arg7[%c0_15, %c0_16, %c0_17, %c0_18] : memref<1x4x8x8xbf16, #tpu.memory_space<vmem>>, vector<1x1x8x4xbf16>
    %38 = vector.shape_cast %37 : vector<1x1x8x4xbf16> to vector<8x4xbf16>
    %39 = vector.shape_cast %36 : vector<8x4xbf16> to vector<1x1x8x4xbf16>
    tpu.vector_store %arg7[%c0_15, %c0_16, %c0_17, %c0_18], %39 {strides = array<i32>} : memref<1x4x8x8xbf16, #tpu.memory_space<vmem>>, vector<1x1x8x4xbf16>,
    %40 = vector.extract_strided_slice %24 {offsets = [0, 0], sizes = [8, 4], strides = [1, 1]} : vector<8x16xf32> to vector<8x4xf32>
    %41 = arith.truncf %40 : vector<8x4xf32> to vector<8x4xbf16>
    %c0_19 = arith.constant 0 : index
    %c0_20 = arith.constant 0 : index
    %c0_21 = arith.constant 0 : index
    %c4_22 = arith.constant 4 : index
    %42 = vector.load %arg7[%c0_19, %c0_20, %c0_21, %c4_22] : memref<1x4x8x8xbf16, #tpu.memory_space<vmem>>, vector<1x1x8x4xbf16>
    %43 = vector.shape_cast %42 : vector<1x1x8x4xbf16> to vector<8x4xbf16>
    %44 = vector.shape_cast %41 : vector<8x4xbf16> to vector<1x1x8x4xbf16>
    tpu.vector_store %arg7[%c0_19, %c0_20, %c0_21, %c4_22], %44 {strides = array<i32>} : memref<1x4x8x8xbf16, #tpu.memory_space<vmem>>, vector<1x1x8x4xbf16>,
    %45 = vector.extract_strided_slice %6 {offsets = [0, 0], sizes = [8, 8], strides = [1, 1]} : vector<8x32xf32> to vector<8x8xf32>
    %46 = arith.truncf %45 : vector<8x8xf32> to vector<8x8xbf16>
    %c0_23 = arith.constant 0 : index
    %c0_24 = arith.constant 0 : index
    %c0_25 = arith.constant 0 : index
    %c0_26 = arith.constant 0 : index
    %47 = vector.load %arg8[%c0_23, %c0_24, %c0_25, %c0_26] : memref<1x4x8x8xbf16, #tpu.memory_space<vmem>>, vector<1x1x8x8xbf16>
    %48 = vector.shape_cast %47 : vector<1x1x8x8xbf16> to vector<8x8xbf16>
    %49 = vector.shape_cast %46 : vector<8x8xbf16> to vector<1x1x8x8xbf16>
    tpu.vector_store %arg8[%c0_23, %c0_24, %c0_25, %c0_26], %49 {strides = array<i32>} : memref<1x4x8x8xbf16, #tpu.memory_space<vmem>>, vector<1x1x8x8xbf16>,
    %50 = vector.extract_strided_slice %15 {offsets = [0, 4], sizes = [8, 4], strides = [1, 1]} : vector<8x16xf32> to vector<8x4xf32>
    %51 = arith.truncf %50 : vector<8x4xf32> to vector<8x4xbf16>
    %c0_27 = arith.constant 0 : index
    %c1 = arith.constant 1 : index
    %c0_28 = arith.constant 0 : index
    %c0_29 = arith.constant 0 : index
    %52 = vector.load %arg6[%c0_27, %c1, %c0_28, %c0_29] : memref<1x4x8x8xbf16, #tpu.memory_space<vmem>>, vector<1x1x8x4xbf16>
    %53 = vector.shape_cast %52 : vector<1x1x8x4xbf16> to vector<8x4xbf16>
    %54 = vector.shape_cast %51 : vector<8x4xbf16> to vector<1x1x8x4xbf16>
    tpu.vector_store %arg6[%c0_27, %c1, %c0_28, %c0_29], %54 {strides = array<i32>} : memref<1x4x8x8xbf16, #tpu.memory_space<vmem>>, vector<1x1x8x4xbf16>,
    %55 = vector.extract_strided_slice %18 {offsets = [0, 4], sizes = [8, 4], strides = [1, 1]} : vector<8x16xf32> to vector<8x4xf32>
    %56 = arith.truncf %55 : vector<8x4xf32> to vector<8x4xbf16>
    %c0_30 = arith.constant 0 : index
    %c1_31 = arith.constant 1 : index
    %c0_32 = arith.constant 0 : index
    %c4_33 = arith.constant 4 : index
    %57 = vector.load %arg6[%c0_30, %c1_31, %c0_32, %c4_33] : memref<1x4x8x8xbf16, #tpu.memory_space<vmem>>, vector<1x1x8x4xbf16>
    %58 = vector.shape_cast %57 : vector<1x1x8x4xbf16> to vector<8x4xbf16>
    %59 = vector.shape_cast %56 : vector<8x4xbf16> to vector<1x1x8x4xbf16>
    tpu.vector_store %arg6[%c0_30, %c1_31, %c0_32, %c4_33], %59 {strides = array<i32>} : memref<1x4x8x8xbf16, #tpu.memory_space<vmem>>, vector<1x1x8x4xbf16>,
    %60 = vector.extract_strided_slice %21 {offsets = [0, 4], sizes = [8, 4], strides = [1, 1]} : vector<8x16xf32> to vector<8x4xf32>
    %61 = arith.truncf %60 : vector<8x4xf32> to vector<8x4xbf16>
    %c0_34 = arith.constant 0 : index
    %c1_35 = arith.constant 1 : index
    %c0_36 = arith.constant 0 : index
    %c0_37 = arith.constant 0 : index
    %62 = vector.load %arg7[%c0_34, %c1_35, %c0_36, %c0_37] : memref<1x4x8x8xbf16, #tpu.memory_space<vmem>>, vector<1x1x8x4xbf16>
    %63 = vector.shape_cast %62 : vector<1x1x8x4xbf16> to vector<8x4xbf16>
    %64 = vector.shape_cast %61 : vector<8x4xbf16> to vector<1x1x8x4xbf16>
    tpu.vector_store %arg7[%c0_34, %c1_35, %c0_36, %c0_37], %64 {strides = array<i32>} : memref<1x4x8x8xbf16, #tpu.memory_space<vmem>>, vector<1x1x8x4xbf16>,
    %65 = vector.extract_strided_slice %24 {offsets = [0, 4], sizes = [8, 4], strides = [1, 1]} : vector<8x16xf32> to vector<8x4xf32>
    %66 = arith.truncf %65 : vector<8x4xf32> to vector<8x4xbf16>
    %c0_38 = arith.constant 0 : index
    %c1_39 = arith.constant 1 : index
    %c0_40 = arith.constant 0 : index
    %c4_41 = arith.constant 4 : index
    %67 = vector.load %arg7[%c0_38, %c1_39, %c0_40, %c4_41] : memref<1x4x8x8xbf16, #tpu.memory_space<vmem>>, vector<1x1x8x4xbf16>
    %68 = vector.shape_cast %67 : vector<1x1x8x4xbf16> to vector<8x4xbf16>
    %69 = vector.shape_cast %66 : vector<8x4xbf16> to vector<1x1x8x4xbf16>
    tpu.vector_store %arg7[%c0_38, %c1_39, %c0_40, %c4_41], %69 {strides = array<i32>} : memref<1x4x8x8xbf16, #tpu.memory_space<vmem>>, vector<1x1x8x4xbf16>,
    %70 = vector.extract_strided_slice %6 {offsets = [0, 8], sizes = [8, 8], strides = [1, 1]} : vector<8x32xf32> to vector<8x8xf32>
    %71 = arith.truncf %70 : vector<8x8xf32> to vector<8x8xbf16>
    %c0_42 = arith.constant 0 : index
    %c1_43 = arith.constant 1 : index
    %c0_44 = arith.constant 0 : index
    %c0_45 = arith.constant 0 : index
    %72 = vector.load %arg8[%c0_42, %c1_43, %c0_44, %c0_45] : memref<1x4x8x8xbf16, #tpu.memory_space<vmem>>, vector<1x1x8x8xbf16>
    %73 = vector.shape_cast %72 : vector<1x1x8x8xbf16> to vector<8x8xbf16>
    %74 = vector.shape_cast %71 : vector<8x8xbf16> to vector<1x1x8x8xbf16>
    tpu.vector_store %arg8[%c0_42, %c1_43, %c0_44, %c0_45], %74 {strides = array<i32>} : memref<1x4x8x8xbf16, #tpu.memory_space<vmem>>, vector<1x1x8x8xbf16>,
    %75 = vector.extract_strided_slice %15 {offsets = [0, 8], sizes = [8, 4], strides = [1, 1]} : vector<8x16xf32> to vector<8x4xf32>
    %76 = arith.truncf %75 : vector<8x4xf32> to vector<8x4xbf16>
    %c0_46 = arith.constant 0 : index
    %c2 = arith.constant 2 : index
    %c0_47 = arith.constant 0 : index
    %c0_48 = arith.constant 0 : index
    %77 = vector.load %arg6[%c0_46, %c2, %c0_47, %c0_48] : memref<1x4x8x8xbf16, #tpu.memory_space<vmem>>, vector<1x1x8x4xbf16>
    %78 = vector.shape_cast %77 : vector<1x1x8x4xbf16> to vector<8x4xbf16>
    %79 = vector.shape_cast %76 : vector<8x4xbf16> to vector<1x1x8x4xbf16>
    tpu.vector_store %arg6[%c0_46, %c2, %c0_47, %c0_48], %79 {strides = array<i32>} : memref<1x4x8x8xbf16, #tpu.memory_space<vmem>>, vector<1x1x8x4xbf16>,
    %80 = vector.extract_strided_slice %18 {offsets = [0, 8], sizes = [8, 4], strides = [1, 1]} : vector<8x16xf32> to vector<8x4xf32>
    %81 = arith.truncf %80 : vector<8x4xf32> to vector<8x4xbf16>
    %c0_49 = arith.constant 0 : index
    %c2_50 = arith.constant 2 : index
    %c0_51 = arith.constant 0 : index
    %c4_52 = arith.constant 4 : index
    %82 = vector.load %arg6[%c0_49, %c2_50, %c0_51, %c4_52] : memref<1x4x8x8xbf16, #tpu.memory_space<vmem>>, vector<1x1x8x4xbf16>
    %83 = vector.shape_cast %82 : vector<1x1x8x4xbf16> to vector<8x4xbf16>
    %84 = vector.shape_cast %81 : vector<8x4xbf16> to vector<1x1x8x4xbf16>
    tpu.vector_store %arg6[%c0_49, %c2_50, %c0_51, %c4_52], %84 {strides = array<i32>} : memref<1x4x8x8xbf16, #tpu.memory_space<vmem>>, vector<1x1x8x4xbf16>,
    %85 = vector.extract_strided_slice %21 {offsets = [0, 8], sizes = [8, 4], strides = [1, 1]} : vector<8x16xf32> to vector<8x4xf32>
    %86 = arith.truncf %85 : vector<8x4xf32> to vector<8x4xbf16>
    %c0_53 = arith.constant 0 : index
    %c2_54 = arith.constant 2 : index
    %c0_55 = arith.constant 0 : index
    %c0_56 = arith.constant 0 : index
    %87 = vector.load %arg7[%c0_53, %c2_54, %c0_55, %c0_56] : memref<1x4x8x8xbf16, #tpu.memory_space<vmem>>, vector<1x1x8x4xbf16>
    %88 = vector.shape_cast %87 : vector<1x1x8x4xbf16> to vector<8x4xbf16>
    %89 = vector.shape_cast %86 : vector<8x4xbf16> to vector<1x1x8x4xbf16>
    tpu.vector_store %arg7[%c0_53, %c2_54, %c0_55, %c0_56], %89 {strides = array<i32>} : memref<1x4x8x8xbf16, #tpu.memory_space<vmem>>, vector<1x1x8x4xbf16>,
    %90 = vector.extract_strided_slice %24 {offsets = [0, 8], sizes = [8, 4], strides = [1, 1]} : vector<8x16xf32> to vector<8x4xf32>
    %91 = arith.truncf %90 : vector<8x4xf32> to vector<8x4xbf16>
    %c0_57 = arith.constant 0 : index
    %c2_58 = arith.constant 2 : index
    %c0_59 = arith.constant 0 : index
    %c4_60 = arith.constant 4 : index
    %92 = vector.load %arg7[%c0_57, %c2_58, %c0_59, %c4_60] : memref<1x4x8x8xbf16, #tpu.memory_space<vmem>>, vector<1x1x8x4xbf16>
    %93 = vector.shape_cast %92 : vector<1x1x8x4xbf16> to vector<8x4xbf16>
    %94 = vector.shape_cast %91 : vector<8x4xbf16> to vector<1x1x8x4xbf16>
    tpu.vector_store %arg7[%c0_57, %c2_58, %c0_59, %c4_60], %94 {strides = array<i32>} : memref<1x4x8x8xbf16, #tpu.memory_space<vmem>>, vector<1x1x8x4xbf16>,
    %95 = vector.extract_strided_slice %6 {offsets = [0, 16], sizes = [8, 8], strides = [1, 1]} : vector<8x32xf32> to vector<8x8xf32>
    %96 = arith.truncf %95 : vector<8x8xf32> to vector<8x8xbf16>
    %c0_61 = arith.constant 0 : index
    %c2_62 = arith.constant 2 : index
    %c0_63 = arith.constant 0 : index
    %c0_64 = arith.constant 0 : index
    %97 = vector.load %arg8[%c0_61, %c2_62, %c0_63, %c0_64] : memref<1x4x8x8xbf16, #tpu.memory_space<vmem>>, vector<1x1x8x8xbf16>
    %98 = vector.shape_cast %97 : vector<1x1x8x8xbf16> to vector<8x8xbf16>
    %99 = vector.shape_cast %96 : vector<8x8xbf16> to vector<1x1x8x8xbf16>
    tpu.vector_store %arg8[%c0_61, %c2_62, %c0_63, %c0_64], %99 {strides = array<i32>} : memref<1x4x8x8xbf16, #tpu.memory_space<vmem>>, vector<1x1x8x8xbf16>,
    %100 = vector.extract_strided_slice %15 {offsets = [0, 12], sizes = [8, 4], strides = [1, 1]} : vector<8x16xf32> to vector<8x4xf32>
    %101 = arith.truncf %100 : vector<8x4xf32> to vector<8x4xbf16>
    %c0_65 = arith.constant 0 : index
    %c3 = arith.constant 3 : index
    %c0_66 = arith.constant 0 : index
    %c0_67 = arith.constant 0 : index
    %102 = vector.load %arg6[%c0_65, %c3, %c0_66, %c0_67] : memref<1x4x8x8xbf16, #tpu.memory_space<vmem>>, vector<1x1x8x4xbf16>
    %103 = vector.shape_cast %102 : vector<1x1x8x4xbf16> to vector<8x4xbf16>
    %104 = vector.shape_cast %101 : vector<8x4xbf16> to vector<1x1x8x4xbf16>
    tpu.vector_store %arg6[%c0_65, %c3, %c0_66, %c0_67], %104 {strides = array<i32>} : memref<1x4x8x8xbf16, #tpu.memory_space<vmem>>, vector<1x1x8x4xbf16>,
    %105 = vector.extract_strided_slice %18 {offsets = [0, 12], sizes = [8, 4], strides = [1, 1]} : vector<8x16xf32> to vector<8x4xf32>
    %106 = arith.truncf %105 : vector<8x4xf32> to vector<8x4xbf16>
    %c0_68 = arith.constant 0 : index
    %c3_69 = arith.constant 3 : index
    %c0_70 = arith.constant 0 : index
    %c4_71 = arith.constant 4 : index
    %107 = vector.load %arg6[%c0_68, %c3_69, %c0_70, %c4_71] : memref<1x4x8x8xbf16, #tpu.memory_space<vmem>>, vector<1x1x8x4xbf16>
    %108 = vector.shape_cast %107 : vector<1x1x8x4xbf16> to vector<8x4xbf16>
    %109 = vector.shape_cast %106 : vector<8x4xbf16> to vector<1x1x8x4xbf16>
    tpu.vector_store %arg6[%c0_68, %c3_69, %c0_70, %c4_71], %109 {strides = array<i32>} : memref<1x4x8x8xbf16, #tpu.memory_space<vmem>>, vector<1x1x8x4xbf16>,
    %110 = vector.extract_strided_slice %21 {offsets = [0, 12], sizes = [8, 4], strides = [1, 1]} : vector<8x16xf32> to vector<8x4xf32>
    %111 = arith.truncf %110 : vector<8x4xf32> to vector<8x4xbf16>
    %c0_72 = arith.constant 0 : index
    %c3_73 = arith.constant 3 : index
    %c0_74 = arith.constant 0 : index
    %c0_75 = arith.constant 0 : index
    %112 = vector.load %arg7[%c0_72, %c3_73, %c0_74, %c0_75] : memref<1x4x8x8xbf16, #tpu.memory_space<vmem>>, vector<1x1x8x4xbf16>
    %113 = vector.shape_cast %112 : vector<1x1x8x4xbf16> to vector<8x4xbf16>
    %114 = vector.shape_cast %111 : vector<8x4xbf16> to vector<1x1x8x4xbf16>
    tpu.vector_store %arg7[%c0_72, %c3_73, %c0_74, %c0_75], %114 {strides = array<i32>} : memref<1x4x8x8xbf16, #tpu.memory_space<vmem>>, vector<1x1x8x4xbf16>,
    %115 = vector.extract_strided_slice %24 {offsets = [0, 12], sizes = [8, 4], strides = [1, 1]} : vector<8x16xf32> to vector<8x4xf32>
    %116 = arith.truncf %115 : vector<8x4xf32> to vector<8x4xbf16>
    %c0_76 = arith.constant 0 : index
    %c3_77 = arith.constant 3 : index
    %c0_78 = arith.constant 0 : index
    %c4_79 = arith.constant 4 : index
    %117 = vector.load %arg7[%c0_76, %c3_77, %c0_78, %c4_79] : memref<1x4x8x8xbf16, #tpu.memory_space<vmem>>, vector<1x1x8x4xbf16>
    %118 = vector.shape_cast %117 : vector<1x1x8x4xbf16> to vector<8x4xbf16>
    %119 = vector.shape_cast %116 : vector<8x4xbf16> to vector<1x1x8x4xbf16>
    tpu.vector_store %arg7[%c0_76, %c3_77, %c0_78, %c4_79], %119 {strides = array<i32>} : memref<1x4x8x8xbf16, #tpu.memory_space<vmem>>, vector<1x1x8x4xbf16>,
    %120 = vector.extract_strided_slice %6 {offsets = [0, 24], sizes = [8, 8], strides = [1, 1]} : vector<8x32xf32> to vector<8x8xf32>
    %121 = arith.truncf %120 : vector<8x8xf32> to vector<8x8xbf16>
    %c0_80 = arith.constant 0 : index
    %c3_81 = arith.constant 3 : index
    %c0_82 = arith.constant 0 : index
    %c0_83 = arith.constant 0 : index
    %122 = vector.load %arg8[%c0_80, %c3_81, %c0_82, %c0_83] : memref<1x4x8x8xbf16, #tpu.memory_space<vmem>>, vector<1x1x8x8xbf16>
    %123 = vector.shape_cast %122 : vector<1x1x8x8xbf16> to vector<8x8xbf16>
    %124 = vector.shape_cast %121 : vector<8x8xbf16> to vector<1x1x8x8xbf16>
    tpu.vector_store %arg8[%c0_80, %c3_81, %c0_82, %c0_83], %124 {strides = array<i32>} : memref<1x4x8x8xbf16, #tpu.memory_space<vmem>>, vector<1x1x8x8xbf16>,
    return
  }
  func.func @transform_0(%arg0: i32, %arg1: i32) -> (i32, i32, i32) {
    %c0_i32 = arith.constant 0 : i32
    %c0_i32_0 = arith.constant 0 : i32
    return %arg0, %arg1, %c0_i32 : i32, i32, i32
  }
  func.func @transform_1(%arg0: i32, %arg1: i32) -> (i32, i32) {
    %c0_i32 = arith.constant 0 : i32
    %c0_i32_0 = arith.constant 0 : i32
    %c0_i32_1 = arith.constant 0 : i32
    return %c0_i32, %c0_i32_0 : i32, i32
  }
  func.func @transform_2(%arg0: i32, %arg1: i32) -> (i32, i32) {
    %c0_i32 = arith.constant 0 : i32
    %c0_i32_0 = arith.constant 0 : i32
    return %arg1, %c0_i32 : i32, i32
  }
  func.func @transform_3(%arg0: i32, %arg1: i32) -> (i32, i32) {
    %c0_i32 = arith.constant 0 : i32
    %c0_i32_0 = arith.constant 0 : i32
    return %arg1, %c0_i32 : i32, i32
  }
  func.func @transform_4(%arg0: i32, %arg1: i32) -> (i32, i32, i32, i32) {
    %c0_i32 = arith.constant 0 : i32
    %c0_i32_0 = arith.constant 0 : i32
    %c0_i32_1 = arith.constant 0 : i32
    return %arg0, %c0_i32, %arg1, %c0_i32_0 : i32, i32, i32, i32
  }
  func.func @transform_5(%arg0: i32, %arg1: i32) -> (i32, i32, i32, i32) {
    %c0_i32 = arith.constant 0 : i32
    %c0_i32_0 = arith.constant 0 : i32
    %c0_i32_1 = arith.constant 0 : i32
    return %arg0, %c0_i32, %arg1, %c0_i32_0 : i32, i32, i32, i32
  }
  func.func @transform_6(%arg0: i32, %arg1: i32) -> (i32, i32, i32, i32) {
    %c0_i32 = arith.constant 0 : i32
    %c0_i32_0 = arith.constant 0 : i32
    %c0_i32_1 = arith.constant 0 : i32
    return %arg0, %c0_i32, %arg1, %c0_i32_0 : i32, i32, i32, i32
  }
}

</mosaic_0001>

<llo_original>
// kernel: tpu_custom_call.1
$region0: #{tpu_custom_call.1}
  #allocation0 [shape = 'u32[]', space=smem, size = 0x4, offset = 0x4, fixed_abs, tag = 'smem constant byte address 0x4 - core index']
  #allocation1 [shape = 'u32[144,128]{1,0:T(1,128)}', space=vmem, size = 0x12000, scoped, tag = 'internal scratch']
  %s0 = inlined_call_operand.hbm [shape: f32[8,128], index: 0, kind: input, shape index: {}]
  %s1 = inlined_call_operand.hbm [shape: f32[16,128], index: 1, kind: output, shape index: {}]
  %s2 = sld [smem:[#allocation0]]
  $region41: #{tpu_custom_call.1} parent=0
    _
  %s4 = ssub.s32 1, %s2
  %s5 = scalar_select 0, %s4, %s2
  $region1: #{tpu_custom_call.1} parent=0
    #allocation2 [shape = 'u8[4096]{0}', space=vmem, size = 0x1000, scoped, tag = 'input window, operand 0, single buffered']
    #allocation3 [shape = 's32[2]{0}', space=sflag, size = 0x8, scoped, tag = 'scoped memory for tpu_custom_call.1']
    #allocation4 [shape = 's32[2]{0}', space=sflag, size = 0x8, scoped, tag = 'scoped memory for tpu_custom_call.1']
    #allocation5 [shape = 'u8[8192]{0}', space=vmem, size = 0x2000, scoped, tag = 'output window, operand 0']
    %6 = vsyncpa [#allocation3], 0
    %7 = vsyncpa [#allocation4], 0
    %s8 = scalar_lea.sflag [#allocation4], 1
    %9 = vsyncpa %s8, 0
    loop: start=0, step=1, limit=4
    $region2: #{tpu_custom_call.1} parent=1 // loop_pre_header
      _
    $region3: #{tpu_custom_call.1} parent=1 // loop_header
      %s11 = sphi 0, %s15
      %p12 = scmp.ge.s32.totalorder %s11, 4
      %s19 = sphi 0, %s19
      %s21 = sphi 0, %s19
      %s22 = sphi 0, %s21
      %s36 = sphi 0, %s22
      %s42 = sphi 0, %s44
      %s45 = sphi 0, %s42
      %s46 = sphi 0, %s45
      %s62 = sphi 0, %s46
    $region4: #{tpu_custom_call.1} parent=1 // loop_header_branch
      %14 = sbr.rel (%p12) target = $region8
    $region5: #{tpu_custom_call.1} parent=1 // loop_body
      %s16 = ssub.s32 %s11, 1
      %s17 = ssub.s32 %s11, 2
      %s18 = sadd.s32 %s11, 1
      %s20 = sadd.s32 %s19, 1
      %p23 = scmp.eq.s32.totalorder %s11, 1
      %p24 = scmp.ne.s32.totalorder %s19, %s21
      %p25 = scmp.eq.s32.totalorder %s11, 0
      %p26 = por %p24, %p25
      %p27 = scmp.ne.s32.totalorder %s19, %s21
      %p28 = scmp.eq.s32.totalorder %s16, 1
      %p29 = por %p27, %p28
      %p30 = scmp.ne.s32.totalorder %s21, %s22
      %p31 = scmp.eq.s32.totalorder %s16, 0
      %p32 = por %p30, %p31
      %p33 = scmp.ne.s32.totalorder %s21, %s22
      %p34 = scmp.eq.s32.totalorder %s17, 1
      %p35 = por %p33, %p34
      %p37 = scmp.ne.s32.totalorder %s22, %s36
      %p38 = scmp.eq.s32.totalorder %s17, 0
      %p39 = por %p37, %p38
      %s40 = ssub.s32 %s11, %s18
      %p41 = scmp.eq.s32.totalorder %s40, 0
      %s43 = sadd.s32 %s42, 1
      %s44 = scalar_select %p41, %s42, %s43
      %p47 = pneg %p41
      %p48 = scmp.eq.s32.totalorder %s11, 1
      %p49 = por %p47, %p48
      %p50 = scmp.ne.s32.totalorder %s42, %s45
      %p51 = scmp.eq.s32.totalorder %s11, 0
      %p52 = por %p50, %p51
      %p53 = scmp.ne.s32.totalorder %s42, %s45
      %p54 = scmp.eq.s32.totalorder %s16, 1
      %p55 = por %p53, %p54
      %p56 = scmp.ne.s32.totalorder %s45, %s46
      %p57 = scmp.eq.s32.totalorder %s16, 0
      %p58 = por %p56, %p57
      %p59 = scmp.ne.s32.totalorder %s45, %s46
      %p60 = scmp.eq.s32.totalorder %s17, 1
      %p61 = por %p59, %p60
      %p63 = scmp.ne.s32.totalorder %s46, %s62
      %p64 = scmp.eq.s32.totalorder %s17, 0
      %p65 = por %p63, %p64
      %p66 = scmp.le.s32.totalorder 1, %s11
      %p67 = scmp.lt.s32.totalorder %s11, 3
      %p68 = pnand %p66, %p67
      %p69 = pneg %p68
      // Predicated region
      $region9: #{tpu_custom_call.1} parent=5 // pred_check
        _
      $region10: #{tpu_custom_call.1} parent=5 // pred_check_branch
        %71 = sbr.rel (%p68) target = $region12
      $region11: #{tpu_custom_call.1} parent=5 // pred_region
        %s72 = ssub.s32 %s11, 1
        // Predicated region
        $region13: #{tpu_custom_call.1} parent=11 // pred_check
          %p73 = pneg %p32
        $region14: #{tpu_custom_call.1} parent=11 // pred_check_branch
          %75 = sbr.rel (%p73) target = $region16
        $region15: #{tpu_custom_call.1} parent=11 // pred_region
          %s77 = ssub.s32 128, 128
          %78 = vsyncadd [#allocation3], %s77
          %s80 = sshll.u32 [#allocation2], 4
          %s81 = int_to_ptr.vmem [resolvable:$true] %s80
          %83 = dma.hbm_to_vmem [thread:$0]  %s0, 128, %s81, [#allocation3]
        $region16: #{tpu_custom_call.1} parent=11 // pred_fallthru
          _
      $region12: #{tpu_custom_call.1} parent=5 // pred_fallthru
        _
      %p84 = scmp.lt.s32.totalorder %s11, 2
      // Predicated region
      $region17: #{tpu_custom_call.1} parent=5 // pred_check
        %p85 = pneg %p84
      $region18: #{tpu_custom_call.1} parent=5 // pred_check_branch
        %87 = sbr.rel (%p85) target = $region20
      $region19: #{tpu_custom_call.1} parent=5 // pred_region
        _
      $region20: #{tpu_custom_call.1} parent=5 // pred_fallthru
        _
      %p88 = scmp.le.s32.totalorder 1, %s11
      %p89 = scmp.lt.s32.totalorder %s11, 3
      %p90 = pnand %p88, %p89
      %p91 = pneg %p90
      // Predicated region
      $region21: #{tpu_custom_call.1} parent=5 // pred_check
        _
      $region22: #{tpu_custom_call.1} parent=5 // pred_check_branch
        %93 = sbr.rel (%p90) target = $region24
      $region23: #{tpu_custom_call.1} parent=5 // pred_region
        %s94 = ssub.s32 %s11, 1
        // Predicated region
        $region25: #{tpu_custom_call.1} parent=23 // pred_check
          %p95 = pneg %p32
        $region26: #{tpu_custom_call.1} parent=23 // pred_check_branch
          %97 = sbr.rel (%p95) target = $region28
        $region27: #{tpu_custom_call.1} parent=23 // pred_region
          %98 = dma.done [#allocation3], 128
        $region28: #{tpu_custom_call.1} parent=23 // pred_fallthru
          _
        %p99 = pneg %p32
        %p100 = pneg %p29
        %p101 = pneg %p58
        %p102 = pneg %p55
        %s103 = sand.u32 %s45, 1
        %s104 = scalar_lea.sflag [#allocation4], %s103
        %s105 = sand.u32 %s45, 1
        %s106 = smul.addr %s105, 8
        %s107 = scalar_lea.vmem [#allocation5], %s106
        %v108 = vld [vmem:[#allocation2] sm:$0xff]
        %v109 = vadd.f32 %v108, 1.0
        %110 = vst [vmem:[%s107] sm:$0xff] %v109
        %s111 = sand.u32 %s45, 1
        %s112 = scalar_lea.sflag [#allocation4], %s111
        %s113 = sand.u32 %s45, 1
        %s114 = smul.addr %s113, 8
        %s115 = scalar_lea.vmem [#allocation5], %s114
        // Predicated region
        $region29: #{tpu_custom_call.1} parent=23 // pred_check
          %p116 = pneg %p55
        $region30: #{tpu_custom_call.1} parent=23 // pred_check_branch
          %118 = sbr.rel (%p116) target = $region32
        $region31: #{tpu_custom_call.1} parent=23 // pred_region
          %s120 = ssub.s32 128, 128
          %121 = vsyncadd %s112, %s120
          %s122 = smul.addr %s16, 128
          %s123 = scalar_lea.hbm %s1, %s122
          %s125 = sshll.u32 %s115, 4
          %s126 = int_to_ptr.vmem [resolvable:$true] %s125
          %128 = dma.vmem_to_hbm [thread:$0]  %s126, 128, %s123, %s112
        $region32: #{tpu_custom_call.1} parent=23 // pred_fallthru
          _
      $region24: #{tpu_custom_call.1} parent=5 // pred_fallthru
        _
      %p129 = scmp.le.s32.totalorder 2, %s11
      // Predicated region
      $region33: #{tpu_custom_call.1} parent=5 // pred_check
        %p130 = pneg %p129
      $region34: #{tpu_custom_call.1} parent=5 // pred_check_branch
        %132 = sbr.rel (%p130) target = $region36
      $region35: #{tpu_custom_call.1} parent=5 // pred_region
        %s133 = ssub.s32 %s11, 2
        // Predicated region
        $region37: #{tpu_custom_call.1} parent=35 // pred_check
          %p134 = pneg %p61
        $region38: #{tpu_custom_call.1} parent=35 // pred_check_branch
          %136 = sbr.rel (%p134) target = $region40
        $region39: #{tpu_custom_call.1} parent=35 // pred_region
          %s137 = sand.u32 %s46, 1
          %s138 = scalar_lea.sflag [#allocation4], %s137
          %s139 = sand.u32 %s46, 1
          %s140 = smul.addr %s139, 8
          %s141 = scalar_lea.vmem [#allocation5], %s140
          %142 = dma.done %s138, 128
        $region40: #{tpu_custom_call.1} parent=35 // pred_fallthru
          _
      $region36: #{tpu_custom_call.1} parent=5 // pred_fallthru
        _
    $region6: #{tpu_custom_call.1} parent=1 // loop_footer
      %s15 = sadd.s32 1, %s11
    $region7: #{tpu_custom_call.1} parent=1 // loop_footer_branch
      %10 = sbr.rel target = $region3
    $region8: #{tpu_custom_call.1} parent=1 // loop_exit
      _
    %143 = vsyncpa [#allocation3], 1
    %s144 = scalar_lea.sflag [#allocation3], 1
    %145 = vsyncpa %s144, 1
    %146 = vsyncpa [#allocation4], 1
    %s147 = scalar_lea.sflag [#allocation4], 1
    %148 = vsyncpa %s147, 1

// kernel: tpu_custom_call.1
$region0: #{tpu_custom_call.1}
  #allocation0 [shape = 'u32[]', space=smem, size = 0x4, offset = 0x4, fixed_abs, tag = 'smem constant byte address 0x4 - core index']
  #allocation1 [shape = 'u32[144,128]{1,0:T(1,128)}', space=vmem, size = 0x12000, scoped, tag = 'internal scratch']
  %s0 = inlined_call_operand.vmem [shape: bf16[2,32,32], index: 0, kind: input, shape index: {}]
  %s1 = inlined_call_operand.vmem [shape: bf16[32,96], index: 1, kind: input, shape index: {}]
  %s2 = inlined_call_operand.vmem [shape: f32[32,16], index: 2, kind: input, shape index: {}]
  %s3 = inlined_call_operand.vmem [shape: f32[32,16], index: 3, kind: input, shape index: {}]
  %s4 = inlined_call_operand.vmem [shape: bf16[2,4,32,8], index: 4, kind: output, shape index: {0}]
  %s5 = inlined_call_operand.vmem [shape: bf16[2,4,32,8], index: 5, kind: output, shape index: {1}]
  %s6 = inlined_call_operand.vmem [shape: bf16[2,4,32,8], index: 6, kind: output, shape index: {2}]
  %7 = xla_tuple %s4, %s5, %s6
  %s8 = sld [smem:[#allocation0]]
  $region176: #{tpu_custom_call.1} parent=0
    _
  %s10 = ssub.s32 1, %s8
  %s11 = scalar_select 0, %s10, %s8
  $region1: #{tpu_custom_call.1} parent=0
    #allocation2 [shape = 'u8[16384]{0}', space=vmem, size = 0x4000, scoped, tag = 'output window, operand 0']
    #allocation3 [shape = 'u8[16384]{0}', space=vmem, size = 0x4000, scoped, tag = 'output window, operand 1']
    #allocation4 [shape = 'u8[16384]{0}', space=vmem, size = 0x4000, scoped, tag = 'output window, operand 2']
    loop: start=0, step=1, limit=10
    $region2: #{tpu_custom_call.1} parent=1 // loop_pre_header
      _
    $region3: #{tpu_custom_call.1} parent=1 // loop_header
      %s13 = sphi 0, %s17
      %p14 = scmp.ge.s32.totalorder %s13, 10
      %s20 = sphi 0, %s32
      %s21 = sphi 0, %s28
      %s22 = sphi 0, %s20
      %s23 = sphi 0, %s21
      %s24 = sphi 0, %s22
      %s25 = sphi 0, %s23
      %s37 = sphi 0, %s39
      %s40 = sphi 0, %s37
      %s41 = sphi 0, %s40
      %s57 = sphi 0, %s41
      %s61 = sphi 0, %s61
      %s63 = sphi 0, %s61
      %s64 = sphi 0, %s63
      %s78 = sphi 0, %s64
      %s84 = sphi 0, %s86
      %s87 = sphi 0, %s84
      %s88 = sphi 0, %s87
      %s104 = sphi 0, %s88
      %s110 = sphi 0, %s112
      %s113 = sphi 0, %s110
      %s114 = sphi 0, %s113
      %s130 = sphi 0, %s114
      %s138 = sphi 0, %s140
      %s141 = sphi 0, %s138
      %s142 = sphi 0, %s141
      %s158 = sphi 0, %s142
      %s166 = sphi 0, %s168
      %s169 = sphi 0, %s166
      %s170 = sphi 0, %s169
      %s186 = sphi 0, %s170
      %s194 = sphi 0, %s196
      %s197 = sphi 0, %s194
      %s198 = sphi 0, %s197
      %s214 = sphi 0, %s198
    $region4: #{tpu_custom_call.1} parent=1 // loop_header_branch
      %16 = sbr.rel (%p14) target = $region8
    $region5: #{tpu_custom_call.1} parent=1 // loop_body
      %s18 = ssub.s32 %s13, 1
      %s19 = ssub.s32 %s13, 2
      %s26 = sadd.s32 1, %s21
      %p27 = scmp.ge.s32.totalorder %s26, 4
      %s28 = scalar_select %p27, 0, %s26
      %s29 = sadd.s32 1, %s20
      %s30 = scalar_select %p27, %s29, %s20
      %p31 = scmp.ge.s32.totalorder %s30, 2
      %s32 = scalar_select %p31, 0, %s30
      %s33 = ssub.s32 %s20, %s32
      %s34 = ssub.s32 %s21, %s28
      %s35 = sor.u32 %s33, %s34
      %p36 = scmp.eq.s32.totalorder %s35, 0
      %s38 = sadd.s32 %s37, 1
      %s39 = scalar_select %p36, %s37, %s38
      %p42 = pneg %p36
      %p43 = scmp.eq.s32.totalorder %s13, 7
      %p44 = por %p42, %p43
      %p45 = scmp.ne.s32.totalorder %s37, %s40
      %p46 = scmp.eq.s32.totalorder %s13, 0
      %p47 = por %p45, %p46
      %p48 = scmp.ne.s32.totalorder %s37, %s40
      %p49 = scmp.eq.s32.totalorder %s18, 7
      %p50 = por %p48, %p49
      %p51 = scmp.ne.s32.totalorder %s40, %s41
      %p52 = scmp.eq.s32.totalorder %s18, 0
      %p53 = por %p51, %p52
      %p54 = scmp.ne.s32.totalorder %s40, %s41
      %p55 = scmp.eq.s32.totalorder %s19, 7
      %p56 = por %p54, %p55
      %p58 = scmp.ne.s32.totalorder %s41, %s57
      %p59 = scmp.eq.s32.totalorder %s19, 0
      %p60 = por %p58, %p59
      %s62 = sadd.s32 %s61, 1
      %p65 = scmp.eq.s32.totalorder %s13, 7
      %p66 = scmp.ne.s32.totalorder %s61, %s63
      %p67 = scmp.eq.s32.totalorder %s13, 0
      %p68 = por %p66, %p67
      %p69 = scmp.ne.s32.totalorder %s61, %s63
      %p70 = scmp.eq.s32.totalorder %s18, 7
      %p71 = por %p69, %p70
      %p72 = scmp.ne.s32.totalorder %s63, %s64
      %p73 = scmp.eq.s32.totalorder %s18, 0
      %p74 = por %p72, %p73
      %p75 = scmp.ne.s32.totalorder %s63, %s64
      %p76 = scmp.eq.s32.totalorder %s19, 7
      %p77 = por %p75, %p76
      %p79 = scmp.ne.s32.totalorder %s64, %s78
      %p80 = scmp.eq.s32.totalorder %s19, 0
      %p81 = por %p79, %p80
      %s82 = ssub.s32 %s21, %s28
      %p83 = scmp.eq.s32.totalorder %s82, 0
      %s85 = sadd.s32 %s84, 1
      %s86 = scalar_select %p83, %s84, %s85
      %p89 = pneg %p83
      %p90 = scmp.eq.s32.totalorder %s13, 7
      %p91 = por %p89, %p90
      %p92 = scmp.ne.s32.totalorder %s84, %s87
      %p93 = scmp.eq.s32.totalorder %s13, 0
      %p94 = por %p92, %p93
      %p95 = scmp.ne.s32.totalorder %s84, %s87
      %p96 = scmp.eq.s32.totalorder %s18, 7
      %p97 = por %p95, %p96
      %p98 = scmp.ne.s32.totalorder %s87, %s88
      %p99 = scmp.eq.s32.totalorder %s18, 0
      %p100 = por %p98, %p99
      %p101 = scmp.ne.s32.totalorder %s87, %s88
      %p102 = scmp.eq.s32.totalorder %s19, 7
      %p103 = por %p101, %p102
      %p105 = scmp.ne.s32.totalorder %s88, %s104
      %p106 = scmp.eq.s32.totalorder %s19, 0
      %p107 = por %p105, %p106
      %s108 = ssub.s32 %s21, %s28
      %p109 = scmp.eq.s32.totalorder %s108, 0
      %s111 = sadd.s32 %s110, 1
      %s112 = scalar_select %p109, %s110, %s111
      %p115 = pneg %p109
      %p116 = scmp.eq.s32.totalorder %s13, 7
      %p117 = por %p115, %p116
      %p118 = scmp.ne.s32.totalorder %s110, %s113
      %p119 = scmp.eq.s32.totalorder %s13, 0
      %p120 = por %p118, %p119
      %p121 = scmp.ne.s32.totalorder %s110, %s113
      %p122 = scmp.eq.s32.totalorder %s18, 7
      %p123 = por %p121, %p122
      %p124 = scmp.ne.s32.totalorder %s113, %s114
      %p125 = scmp.eq.s32.totalorder %s18, 0
      %p126 = por %p124, %p125
      %p127 = scmp.ne.s32.totalorder %s113, %s114
      %p128 = scmp.eq.s32.totalorder %s19, 7
      %p129 = por %p127, %p128
      %p131 = scmp.ne.s32.totalorder %s114, %s130
      %p132 = scmp.eq.s32.totalorder %s19, 0
      %p133 = por %p131, %p132
      %s134 = ssub.s32 %s20, %s32
      %s135 = ssub.s32 %s21, %s28
      %s136 = sor.u32 %s134, %s135
      %p137 = scmp.eq.s32.totalorder %s136, 0
      %s139 = sadd.s32 %s138, 1
      %s140 = scalar_select %p137, %s138, %s139
      %p143 = pneg %p137
      %p144 = scmp.eq.s32.totalorder %s13, 7
      %p145 = por %p143, %p144
      %p146 = scmp.ne.s32.totalorder %s138, %s141
      %p147 = scmp.eq.s32.totalorder %s13, 0
      %p148 = por %p146, %p147
      %p149 = scmp.ne.s32.totalorder %s138, %s141
      %p150 = scmp.eq.s32.totalorder %s18, 7
      %p151 = por %p149, %p150
      %p152 = scmp.ne.s32.totalorder %s141, %s142
      %p153 = scmp.eq.s32.totalorder %s18, 0
      %p154 = por %p152, %p153
      %p155 = scmp.ne.s32.totalorder %s141, %s142
      %p156 = scmp.eq.s32.totalorder %s19, 7
      %p157 = por %p155, %p156
      %p159 = scmp.ne.s32.totalorder %s142, %s158
      %p160 = scmp.eq.s32.totalorder %s19, 0
      %p161 = por %p159, %p160
      %s162 = ssub.s32 %s20, %s32
      %s163 = ssub.s32 %s21, %s28
      %s164 = sor.u32 %s162, %s163
      %p165 = scmp.eq.s32.totalorder %s164, 0
      %s167 = sadd.s32 %s166, 1
      %s168 = scalar_select %p165, %s166, %s167
      %p171 = pneg %p165
      %p172 = scmp.eq.s32.totalorder %s13, 7
      %p173 = por %p171, %p172
      %p174 = scmp.ne.s32.totalorder %s166, %s169
      %p175 = scmp.eq.s32.totalorder %s13, 0
      %p176 = por %p174, %p175
      %p177 = scmp.ne.s32.totalorder %s166, %s169
      %p178 = scmp.eq.s32.totalorder %s18, 7
      %p179 = por %p177, %p178
      %p180 = scmp.ne.s32.totalorder %s169, %s170
      %p181 = scmp.eq.s32.totalorder %s18, 0
      %p182 = por %p180, %p181
      %p183 = scmp.ne.s32.totalorder %s169, %s170
      %p184 = scmp.eq.s32.totalorder %s19, 7
      %p185 = por %p183, %p184
      %p187 = scmp.ne.s32.totalorder %s170, %s186
      %p188 = scmp.eq.s32.totalorder %s19, 0
      %p189 = por %p187, %p188
      %s190 = ssub.s32 %s20, %s32
      %s191 = ssub.s32 %s21, %s28
      %s192 = sor.u32 %s190, %s191
      %p193 = scmp.eq.s32.totalorder %s192, 0
      %s195 = sadd.s32 %s194, 1
      %s196 = scalar_select %p193, %s194, %s195
      %p199 = pneg %p193
      %p200 = scmp.eq.s32.totalorder %s13, 7
      %p201 = por %p199, %p200
      %p202 = scmp.ne.s32.totalorder %s194, %s197
      %p203 = scmp.eq.s32.totalorder %s13, 0
      %p204 = por %p202, %p203
      %p205 = scmp.ne.s32.totalorder %s194, %s197
      %p206 = scmp.eq.s32.totalorder %s18, 7
      %p207 = por %p205, %p206
      %p208 = scmp.ne.s32.totalorder %s197, %s198
      %p209 = scmp.eq.s32.totalorder %s18, 0
      %p210 = por %p208, %p209
      %p211 = scmp.ne.s32.totalorder %s197, %s198
      %p212 = scmp.eq.s32.totalorder %s19, 7
      %p213 = por %p211, %p212
      %p215 = scmp.ne.s32.totalorder %s198, %s214
      %p216 = scmp.eq.s32.totalorder %s19, 0
      %p217 = por %p215, %p216
      %p218 = scmp.le.s32.totalorder 1, %s13
      %p219 = scmp.lt.s32.totalorder %s13, 9
      %p220 = pnand %p218, %p219
      %p221 = pneg %p220
      // Predicated region
      $region9: #{tpu_custom_call.1} parent=5 // pred_check
        _
      $region10: #{tpu_custom_call.1} parent=5 // pred_check_branch
        %223 = sbr.rel (%p220) target = $region12
      $region11: #{tpu_custom_call.1} parent=5 // pred_region
        %s224 = ssub.s32 %s13, 1
        // Predicated region
        $region13: #{tpu_custom_call.1} parent=11 // pred_check
          %p225 = pneg %p74
        $region14: #{tpu_custom_call.1} parent=11 // pred_check_branch
          %227 = sbr.rel (%p225) target = $region16
        $region15: #{tpu_custom_call.1} parent=11 // pred_region
          _
        $region16: #{tpu_custom_call.1} parent=11 // pred_fallthru
          _
      $region12: #{tpu_custom_call.1} parent=5 // pred_fallthru
        _
      %p228 = scmp.lt.s32.totalorder %s13, 8
      // Predicated region
      $region17: #{tpu_custom_call.1} parent=5 // pred_check
        %p229 = pneg %p228
      $region18: #{tpu_custom_call.1} parent=5 // pred_check_branch
        %231 = sbr.rel (%p229) target = $region20
      $region19: #{tpu_custom_call.1} parent=5 // pred_region
        // Predicated region
        $region21: #{tpu_custom_call.1} parent=19 // pred_check
          %p232 = pneg %p47
        $region22: #{tpu_custom_call.1} parent=19 // pred_check_branch
          %234 = sbr.rel (%p232) target = $region24
        $region23: #{tpu_custom_call.1} parent=19 // pred_region
          %p235 = scmp.lt.s32.totalorder %s20, 1
          %s236 = scalar_select %p235, %s20, 1
          %p237 = scmp.lt.s32.totalorder %s21, 3
          %s238 = scalar_select %p237, %s21, 3
          %s239 = smul.addr %s236, 4
          %s240 = sadd.s32 %s238, %s239
          %s241 = smul.addr %s240, 4
          %s242 = scalar_lea.vmem %s0, %s241
        $region24: #{tpu_custom_call.1} parent=19 // pred_fallthru
          _
        // Predicated region
        $region25: #{tpu_custom_call.1} parent=19 // pred_check
          %p243 = pneg %p94
        $region26: #{tpu_custom_call.1} parent=19 // pred_check_branch
          %245 = sbr.rel (%p243) target = $region28
        $region27: #{tpu_custom_call.1} parent=19 // pred_region
          %p246 = scmp.lt.s32.totalorder %s21, 3
          %s247 = scalar_select %p246, %s21, 3
          %s248 = smul.addr %s247, 8
          %s249 = scalar_lea.vmem %s2, %s248
        $region28: #{tpu_custom_call.1} parent=19 // pred_fallthru
          _
        // Predicated region
        $region29: #{tpu_custom_call.1} parent=19 // pred_check
          %p250 = pneg %p120
        $region30: #{tpu_custom_call.1} parent=19 // pred_check_branch
          %252 = sbr.rel (%p250) target = $region32
        $region31: #{tpu_custom_call.1} parent=19 // pred_region
          %p253 = scmp.lt.s32.totalorder %s21, 3
          %s254 = scalar_select %p253, %s21, 3
          %s255 = smul.addr %s254, 8
          %s256 = scalar_lea.vmem %s3, %s255
        $region32: #{tpu_custom_call.1} parent=19 // pred_fallthru
          _
      $region20: #{tpu_custom_call.1} parent=5 // pred_fallthru
        _
      %p257 = scmp.le.s32.totalorder 1, %s13
      %p258 = scmp.lt.s32.totalorder %s13, 9
      %p259 = pnand %p257, %p258
      %p260 = pneg %p259
      // Predicated region
      $region33: #{tpu_custom_call.1} parent=5 // pred_check
        _
      $region34: #{tpu_custom_call.1} parent=5 // pred_check_branch
        %262 = sbr.rel (%p259) target = $region36
      $region35: #{tpu_custom_call.1} parent=5 // pred_region
        %s263 = ssub.s32 %s13, 1
        %p264 = scmp.lt.s32.totalorder %s22, 1
        %s265 = scalar_select %p264, %s22, 1
        %p266 = scmp.lt.s32.totalorder %s23, 3
        %s267 = scalar_select %p266, %s23, 3
        %s268 = smul.addr %s265, 4
        %s269 = sadd.s32 %s267, %s268
        %s270 = smul.addr %s269, 4
        %s271 = scalar_lea.vmem %s0, %s270
        %p272 = pneg %p53
        %p273 = pneg %p50
        %p274 = pneg %p74
        %p275 = pneg %p71
        %p276 = scmp.lt.s32.totalorder %s23, 3
        %s277 = scalar_select %p276, %s23, 3
        %s278 = smul.addr %s277, 8
        %s279 = scalar_lea.vmem %s2, %s278
        %p280 = pneg %p100
        %p281 = pneg %p97
        %p282 = scmp.lt.s32.totalorder %s23, 3
        %s283 = scalar_select %p282, %s23, 3
        %s284 = smul.addr %s283, 8
        %s285 = scalar_lea.vmem %s3, %s284
        %p286 = pneg %p126
        %p287 = pneg %p123
        %p288 = pneg %p154
        %p289 = pneg %p151
        %s290 = sand.u32 %s141, 1
        %s291 = sand.u32 %s141, 1
        %s292 = smul.addr %s291, 16
        %s293 = scalar_lea.vmem [#allocation2], %s292
        %p294 = pneg %p182
        %p295 = pneg %p179
        %s296 = sand.u32 %s169, 1
        %s297 = sand.u32 %s169, 1
        %s298 = smul.addr %s297, 16
        %s299 = scalar_lea.vmem [#allocation3], %s298
        %p300 = pneg %p210
        %p301 = pneg %p207
        %s302 = sand.u32 %s197, 1
        %s303 = sand.u32 %s197, 1
        %s304 = smul.addr %s303, 16
        %s305 = scalar_lea.vmem [#allocation4], %s304
        %p306 = scmp.lt.s32.totalorder %s22, 1
        %s307 = scalar_select %p306, %s22, 1
        %p308 = scmp.lt.s32.totalorder %s23, 3
        %s309 = scalar_select %p308, %s23, 3
        %s310 = smul.addr %s307, 4
        %s311 = sadd.s32 %s309, %s310
        %s312 = smul.addr %s311, 4
        %s313 = scalar_lea.vmem %s0, %s312
        %p314 = scmp.lt.s32.totalorder %s23, 3
        %s315 = scalar_select %p314, %s23, 3
        %s316 = smul.addr %s315, 8
        %s317 = scalar_lea.vmem %s2, %s316
        %p318 = scmp.lt.s32.totalorder %s23, 3
        %s319 = scalar_select %p318, %s23, 3
        %s320 = smul.addr %s319, 8
        %s321 = scalar_lea.vmem %s3, %s320
        %v323 = vld [vmem:[%s313] sm:$0xf]
        %v324 = vld [vmem:[%s1] sm:$0xf]
        %v325 = vld [vmem:[%s1 + $0x4] sm:$0xf]
        %v326 = vld [vmem:[%s1 + $0x8] sm:$0xf]
        %v327 = vld [vmem:[%s1 + $0xc] sm:$0xf]
        %v332 = vunpack.c.l.b16 %v324
        %v333 = vunpack.c.l.b16 %v325
        %v334 = vunpack.c.l.b16 %v326
        %v335 = vunpack.c.l.b16 %v327
        %v336 = vpack.c.b16 %v333, %v332
        %v337 = vpack.c.b16 %v335, %v334
        %vm340 = vcmask 261120
        %v342 = vsel %vm340, %v323, 0
        %344 = vmatprep.subr.bf16.mxu0 0
        %345 = vmatpush1.bf16.msra.mxu0 0
        %346 = vmatprep.subr.bf16.mxu0 0
        %347 = vmatpush1.bf16.msra.mxu0 0
        %348 = vmatprep.subr.bf16.mxu0 0
        %349 = vmatpush1.bf16.msra.mxu0 0
        %350 = vmatprep.subr.bf16.mxu0 0
        %351 = vmatpush1.bf16.msra.mxu0 0
        %352 = vmatprep.subr.bf16.mxu0 0
        %353 = vmatpush1.bf16.msra.mxu0 0
        %354 = vmatprep.subr.bf16.mxu0 0
        %355 = vmatpush1.bf16.msra.mxu0 0
        %356 = vmatprep.subr.bf16.mxu0 0
        %357 = vmatpush1.bf16.msra.mxu0 %v337
        %358 = vmatprep.subr.bf16.mxu0 0
        %359 = vmatpush1.bf16.msra.mxu0 %v336
        %360 = vmatprep.subr.bf16.mxu0 0
        %361 = vmatpush2.bf16.msra.mxu0 0
        %362 = vmatprep.subr.bf16.mxu0 0
        %363 = vmatpush2.bf16.msra.mxu0 0
        %364 = vmatprep.subr.bf16.mxu0 0
        %365 = vmatpush2.bf16.msra.mxu0 0
        %366 = vmatprep.subr.bf16.mxu0 0
        %367 = vmatpush2.bf16.msra.mxu0 0
        %368 = vmatprep.subr.bf16.mxu0 0
        %369 = vmatpush2.bf16.msra.mxu0 0
        %370 = vmatprep.subr.bf16.mxu0 0
        %371 = vmatpush2.bf16.msra.mxu0 0
        %372 = vmatprep.subr.bf16.mxu0 0
        %373 = vmatpush2.bf16.msra.mxu0 0
        %374 = vmatprep.subr.bf16.mxu0 0
        %375 = vmatpush2.bf16.msra.mxu0 0
        %376 = vmatprep.mubr.bf16.mxu0 0
        %377 = vmatmul.mubr.bf16.gmra.mxu0 %v342
        %v378 = vpop.f32.mrf.mxu0
        %v379 = vadd.f32 0.0, %v378
        %v380 = vpop.f32.mrf.mxu0
        %v381 = vpop.f32.mrf.mxu0
        %v382 = vpop.f32.mrf.mxu0
        %383 = vdwg.mxu0
        %v384 = vld [vmem:[%s317] sm:$0xff]
        %v385 = vld [vmem:[%s321] sm:$0xff]
        %v386 = vmul.f32 %v379, %v384
        %388 = vrot.lane.b32.xlu0 %v385, 16
        %v389 = vpop.permute.xlu0 %388
        %v391 = vmul.f32 %v379, %v389
        %393 = vrot.lane.b32.xlu0 %v391, 112
        %v394 = vpop.permute.xlu0 %393
        %v396 = vsub.f32 %v386, %v394
        %398 = vrot.lane.b32.xlu0 %v384, 16
        %v399 = vpop.permute.xlu0 %398
        %v401 = vmul.f32 %v379, %v399
        %v402 = vmul.f32 %v379, %v385
        %404 = vrot.lane.b32.xlu0 %v402, 16
        %v405 = vpop.permute.xlu0 %404
        %v407 = vadd.f32 %v401, %v405
        %408 = vrot.lane.b32.xlu0 %v384, 32
        %v409 = vpop.permute.xlu0 %408
        %v411 = vmul.f32 %v379, %v409
        %412 = vrot.lane.b32.xlu0 %v385, 48
        %v413 = vpop.permute.xlu0 %412
        %v415 = vmul.f32 %v379, %v413
        %417 = vrot.lane.b32.xlu0 %v415, 112
        %v418 = vpop.permute.xlu0 %417
        %v420 = vsub.f32 %v411, %v418
        %421 = vrot.lane.b32.xlu0 %v384, 48
        %v422 = vpop.permute.xlu0 %421
        %v424 = vmul.f32 %v379, %v422
        %425 = vrot.lane.b32.xlu0 %v385, 32
        %v426 = vpop.permute.xlu0 %425
        %v428 = vmul.f32 %v379, %v426
        %430 = vrot.lane.b32.xlu0 %v428, 16
        %v431 = vpop.permute.xlu0 %430
        %v433 = vadd.f32 %v424, %v431
        %v434 = vpack.c.bf16 %v396, %v396
        %vm435 = vcmask 27648
        %436 = vst.msk [vmem:[%s293] sm:$0xf] %vm435, %v434
        %v437 = vpack.c.bf16 %v407, %v407
        %v439 = vunpack.c.l.b16 %v437
        %v440 = vpack.c.b16 %v439, %v439
        %441 = vrot.lane.b32.xlu0 %v440, 116
        %v442 = vpop.permute.xlu0 %441
        %vm444 = vcmask 60448
        %445 = vst.msk [vmem:[%s293] sm:$0xf] %vm444, %v442
        %v446 = vpack.c.bf16 %v420, %v420
        %v448 = vunpack.c.l.b16 %v446
        %v449 = vpack.c.b16 %v448, %v448
        %450 = vrot.lane.b32.xlu0 %v449, 96
        %v451 = vpop.permute.xlu0 %450
        %453 = vst.msk [vmem:[%s299] sm:$0xf] %vm435, %v451
        %v454 = vpack.c.bf16 %v433, %v433
        %v456 = vunpack.c.l.b16 %v454
        %v457 = vpack.c.b16 %v456, %v456
        %458 = vrot.lane.b32.xlu0 %v457, 84
        %v459 = vpop.permute.xlu0 %458
        %461 = vst.msk [vmem:[%s299] sm:$0xf] %vm444, %v459
        %v462 = vpack.c.bf16 %v379, %v379
        %v464 = vunpack.c.l.b16 %v462
        %v465 = vpack.c.b16 %v464, %v464
        %466 = vrot.lane.b32.xlu0 %v465, 64
        %v467 = vpop.permute.xlu0 %466
        %vm469 = vcmask 60416
        %470 = vst.msk [vmem:[%s305] sm:$0xf] %vm469, %v467
        %v472 = vunpack.c.l.b16 %v434
        %v473 = vpack.c.b16 %v472, %v472
        %474 = vrot.lane.b32.xlu0 %v473, 124
        %v475 = vpop.permute.xlu0 %474
        %s477 = scalar_lea.vmem %s293, 4 [#allocation2]
        %478 = vst.msk [vmem:[%s477] sm:$0xf] %vm435, %v475
        %479 = vrot.lane.b32.xlu0 %v440, 112
        %v480 = vpop.permute.xlu0 %479
        %482 = vst.msk [vmem:[%s477] sm:$0xf] %vm444, %v480
        %483 = vrot.lane.b32.xlu0 %v449, 92
        %v484 = vpop.permute.xlu0 %483
        %s486 = scalar_lea.vmem %s299, 4 [#allocation3]
        %487 = vst.msk [vmem:[%s486] sm:$0xf] %vm435, %v484
        %488 = vrot.lane.b32.xlu0 %v457, 80
        %v489 = vpop.permute.xlu0 %488
        %491 = vst.msk [vmem:[%s486] sm:$0xf] %vm444, %v489
        %492 = vrot.lane.b32.xlu0 %v465, 56
        %v493 = vpop.permute.xlu0 %492
        %s495 = scalar_lea.vmem %s305, 4 [#allocation4]
        %496 = vst.msk [vmem:[%s495] sm:$0xf] %vm469, %v493
        %497 = vrot.lane.b32.xlu0 %v473, 120
        %v498 = vpop.permute.xlu0 %497
        %s500 = scalar_lea.vmem %s293, 8 [#allocation2]
        %501 = vst.msk [vmem:[%s500] sm:$0xf] %vm435, %v498
        %502 = vrot.lane.b32.xlu0 %v440, 108
        %v503 = vpop.permute.xlu0 %502
        %505 = vst.msk [vmem:[%s500] sm:$0xf] %vm444, %v503
        %506 = vrot.lane.b32.xlu0 %v449, 88
        %v507 = vpop.permute.xlu0 %506
        %s509 = scalar_lea.vmem %s299, 8 [#allocation3]
        %510 = vst.msk [vmem:[%s509] sm:$0xf] %vm435, %v507
        %511 = vrot.lane.b32.xlu0 %v457, 76
        %v512 = vpop.permute.xlu0 %511
        %514 = vst.msk [vmem:[%s509] sm:$0xf] %vm444, %v512
        %515 = vrot.lane.b32.xlu0 %v465, 48
        %v516 = vpop.permute.xlu0 %515
        %s518 = scalar_lea.vmem %s305, 8 [#allocation4]
        %519 = vst.msk [vmem:[%s518] sm:$0xf] %vm469, %v516
        %520 = vrot.lane.b32.xlu0 %v473, 116
        %v521 = vpop.permute.xlu0 %520
        %s523 = scalar_lea.vmem %s293, 12 [#allocation2]
        %524 = vst.msk [vmem:[%s523] sm:$0xf] %vm435, %v521
        %525 = vrot.lane.b32.xlu0 %v440, 104
        %v526 = vpop.permute.xlu0 %525
        %528 = vst.msk [vmem:[%s523] sm:$0xf] %vm444, %v526
        %529 = vrot.lane.b32.xlu0 %v449, 84
        %v530 = vpop.permute.xlu0 %529
        %s532 = scalar_lea.vmem %s299, 12 [#allocation3]
        %533 = vst.msk [vmem:[%s532] sm:$0xf] %vm435, %v530
        %534 = vrot.lane.b32.xlu0 %v457, 72
        %v535 = vpop.permute.xlu0 %534
        %537 = vst.msk [vmem:[%s532] sm:$0xf] %vm444, %v535
        %538 = vrot.lane.b32.xlu0 %v465, 40
        %v539 = vpop.permute.xlu0 %538
        %s541 = scalar_lea.vmem %s305, 12 [#allocation4]
        %542 = vst.msk [vmem:[%s541] sm:$0xf] %vm469, %v539
        %s543 = sand.u32 %s141, 1
        %s544 = sand.u32 %s141, 1
        %s545 = smul.addr %s544, 16
        %s546 = scalar_lea.vmem [#allocation2], %s545
        %s547 = sand.u32 %s169, 1
        %s548 = sand.u32 %s169, 1
        %s549 = smul.addr %s548, 16
        %s550 = scalar_lea.vmem [#allocation3], %s549
        %s551 = sand.u32 %s197, 1
        %s552 = sand.u32 %s197, 1
        %s553 = smul.addr %s552, 16
        %s554 = scalar_lea.vmem [#allocation4], %s553
        // Predicated region
        $region37: #{tpu_custom_call.1} parent=35 // pred_check
          %p555 = pneg %p151
        $region38: #{tpu_custom_call.1} parent=35 // pred_check_branch
          %557 = sbr.rel (%p555) target = $region40
        $region39: #{tpu_custom_call.1} parent=35 // pred_region
          %s558 = smul.addr %s22, 16
          %s559 = sadd.s32 %s23, %s558
          %s560 = smul.addr %s559, 4
          %s561 = scalar_lea.vmem %s4, %s560
          // Predicated region
          $region41: #{tpu_custom_call.1} parent=39 // pred_check
            _
          $region42: #{tpu_custom_call.1} parent=39 // pred_check_branch
            %563 = sbr.rel (0) target = $region44
          $region43: #{tpu_custom_call.1} parent=39 // pred_region
            // Predicated region
            $region45: #{tpu_custom_call.1} parent=43 // pred_check
              _
            $region46: #{tpu_custom_call.1} parent=43 // pred_check_branch
              %565 = sbr.rel target = $region48
            $region47: #{tpu_custom_call.1} parent=43 // pred_region
              // Predicated region
              $region60: #{tpu_custom_call.1} parent=47 // pred_check
                _
              $region61: #{tpu_custom_call.1} parent=47 // pred_check_branch
                %587 = sbr.rel (0) target = $region63
              $region62: #{tpu_custom_call.1} parent=47 // pred_region
                loop: start=0, step=1, limit=1
                $region64: #{tpu_custom_call.1} parent=62 // loop_pre_header
                  _
                $region65: #{tpu_custom_call.1} parent=62 // loop_header
                  %s589 = sphi 0, %s593
                  %p590 = scmp.ge.s32.totalorder %s589, 1
                  %s594 = sphi %s546, %s546
                  %s595 = sphi %s561, %s561
                $region66: #{tpu_custom_call.1} parent=62 // loop_header_branch
                  %592 = sbr.rel (%p590) target = $region70
                $region67: #{tpu_custom_call.1} parent=62 // loop_body
                  _
                $region68: #{tpu_custom_call.1} parent=62 // loop_footer
                  %s593 = sadd.s32 1, %s589
                $region69: #{tpu_custom_call.1} parent=62 // loop_footer_branch
                  %588 = sbr.rel target = $region65
                $region70: #{tpu_custom_call.1} parent=62 // loop_exit
                  _
                %s597 = ssub.s32 16, 1
                loop: start=0, step=1, limit=1
                $region71: #{tpu_custom_call.1} parent=62 // loop_pre_header
                  _
                $region72: #{tpu_custom_call.1} parent=62 // loop_header
                  %s599 = sphi 0, %s603
                  %p600 = scmp.ge.s32.totalorder %s599, 1
                  %s604 = sphi %s546, %s546
                  %s605 = sphi %s561, %s561
                $region73: #{tpu_custom_call.1} parent=62 // loop_header_branch
                  %602 = sbr.rel (%p600) target = $region77
                $region74: #{tpu_custom_call.1} parent=62 // loop_body
                  %v606 = vld [vmem:[%s604] sm:%s597]
                  %607 = vst [vmem:[%s605] sm:%s597] %v606
                  %v608 = vld [vmem:[%s604 + $0x4] sm:%s597]
                  %609 = vst [vmem:[%s605 + $0x10] sm:%s597] %v608
                  %v610 = vld [vmem:[%s604 + $0x8] sm:%s597]
                  %611 = vst [vmem:[%s605 + $0x20] sm:%s597] %v610
                  %v612 = vld [vmem:[%s604 + $0xc] sm:%s597]
                  %613 = vst [vmem:[%s605 + $0x30] sm:%s597] %v612
                $region75: #{tpu_custom_call.1} parent=62 // loop_footer
                  %s603 = sadd.s32 1, %s599
                $region76: #{tpu_custom_call.1} parent=62 // loop_footer_branch
                  %598 = sbr.rel target = $region72
                $region77: #{tpu_custom_call.1} parent=62 // loop_exit
                  _
              $region63: #{tpu_custom_call.1} parent=47 // pred_fallthru
                _
            $region48: #{tpu_custom_call.1} parent=43 // pred_fallthru
              _
            // Predicated region
            $region49: #{tpu_custom_call.1} parent=43 // pred_check
              _
            $region50: #{tpu_custom_call.1} parent=43 // pred_check_branch
              %567 = sbr.rel (0) target = $region52
            $region51: #{tpu_custom_call.1} parent=43 // pred_region
              %s569 = ssub.s32 16, 1
              loop: start=0, step=1, limit=1
              $region53: #{tpu_custom_call.1} parent=51 // loop_pre_header
                _
              $region54: #{tpu_custom_call.1} parent=51 // loop_header
                %s571 = sphi 0, %s575
                %p572 = scmp.ge.s32.totalorder %s571, 1
                %s576 = sphi %s546, %s546
                %s577 = sphi %s561, %s561
              $region55: #{tpu_custom_call.1} parent=51 // loop_header_branch
                %574 = sbr.rel (%p572) target = $region59
              $region56: #{tpu_custom_call.1} parent=51 // loop_body
                %v578 = vld [vmem:[%s576] sm:%s569]
                %579 = vst [vmem:[%s577] sm:%s569] %v578
                %v580 = vld [vmem:[%s576 + $0x4] sm:%s569]
                %581 = vst [vmem:[%s577 + $0x10] sm:%s569] %v580
                %v582 = vld [vmem:[%s576 + $0x8] sm:%s569]
                %583 = vst [vmem:[%s577 + $0x20] sm:%s569] %v582
                %v584 = vld [vmem:[%s576 + $0xc] sm:%s569]
                %585 = vst [vmem:[%s577 + $0x30] sm:%s569] %v584
              $region57: #{tpu_custom_call.1} parent=51 // loop_footer
                %s575 = sadd.s32 1, %s571
              $region58: #{tpu_custom_call.1} parent=51 // loop_footer_branch
                %570 = sbr.rel target = $region54
              $region59: #{tpu_custom_call.1} parent=51 // loop_exit
                _
            $region52: #{tpu_custom_call.1} parent=43 // pred_fallthru
              _
          $region44: #{tpu_custom_call.1} parent=39 // pred_fallthru
            _
          %614 = vnop
        $region40: #{tpu_custom_call.1} parent=35 // pred_fallthru
          _
        // Predicated region
        $region78: #{tpu_custom_call.1} parent=35 // pred_check
          %p615 = pneg %p179
        $region79: #{tpu_custom_call.1} parent=35 // pred_check_branch
          %617 = sbr.rel (%p615) target = $region81
        $region80: #{tpu_custom_call.1} parent=35 // pred_region
          %s618 = smul.addr %s22, 16
          %s619 = sadd.s32 %s23, %s618
          %s620 = smul.addr %s619, 4
          %s621 = scalar_lea.vmem %s5, %s620
          // Predicated region
          $region82: #{tpu_custom_call.1} parent=80 // pred_check
            _
          $region83: #{tpu_custom_call.1} parent=80 // pred_check_branch
            %623 = sbr.rel (0) target = $region85
          $region84: #{tpu_custom_call.1} parent=80 // pred_region
            // Predicated region
            $region86: #{tpu_custom_call.1} parent=84 // pred_check
              _
            $region87: #{tpu_custom_call.1} parent=84 // pred_check_branch
              %625 = sbr.rel target = $region89
            $region88: #{tpu_custom_call.1} parent=84 // pred_region
              // Predicated region
              $region101: #{tpu_custom_call.1} parent=88 // pred_check
                _
              $region102: #{tpu_custom_call.1} parent=88 // pred_check_branch
                %647 = sbr.rel (0) target = $region104
              $region103: #{tpu_custom_call.1} parent=88 // pred_region
                loop: start=0, step=1, limit=1
                $region105: #{tpu_custom_call.1} parent=103 // loop_pre_header
                  _
                $region106: #{tpu_custom_call.1} parent=103 // loop_header
                  %s649 = sphi 0, %s653
                  %p650 = scmp.ge.s32.totalorder %s649, 1
                  %s654 = sphi %s550, %s550
                  %s655 = sphi %s621, %s621
                $region107: #{tpu_custom_call.1} parent=103 // loop_header_branch
                  %652 = sbr.rel (%p650) target = $region111
                $region108: #{tpu_custom_call.1} parent=103 // loop_body
                  _
                $region109: #{tpu_custom_call.1} parent=103 // loop_footer
                  %s653 = sadd.s32 1, %s649
                $region110: #{tpu_custom_call.1} parent=103 // loop_footer_branch
                  %648 = sbr.rel target = $region106
                $region111: #{tpu_custom_call.1} parent=103 // loop_exit
                  _
                %s657 = ssub.s32 16, 1
                loop: start=0, step=1, limit=1
                $region112: #{tpu_custom_call.1} parent=103 // loop_pre_header
                  _
                $region113: #{tpu_custom_call.1} parent=103 // loop_header
                  %s659 = sphi 0, %s663
                  %p660 = scmp.ge.s32.totalorder %s659, 1
                  %s664 = sphi %s550, %s550
                  %s665 = sphi %s621, %s621
                $region114: #{tpu_custom_call.1} parent=103 // loop_header_branch
                  %662 = sbr.rel (%p660) target = $region118
                $region115: #{tpu_custom_call.1} parent=103 // loop_body
                  %v666 = vld [vmem:[%s664] sm:%s657]
                  %667 = vst [vmem:[%s665] sm:%s657] %v666
                  %v668 = vld [vmem:[%s664 + $0x4] sm:%s657]
                  %669 = vst [vmem:[%s665 + $0x10] sm:%s657] %v668
                  %v670 = vld [vmem:[%s664 + $0x8] sm:%s657]
                  %671 = vst [vmem:[%s665 + $0x20] sm:%s657] %v670
                  %v672 = vld [vmem:[%s664 + $0xc] sm:%s657]
                  %673 = vst [vmem:[%s665 + $0x30] sm:%s657] %v672
                $region116: #{tpu_custom_call.1} parent=103 // loop_footer
                  %s663 = sadd.s32 1, %s659
                $region117: #{tpu_custom_call.1} parent=103 // loop_footer_branch
                  %658 = sbr.rel target = $region113
                $region118: #{tpu_custom_call.1} parent=103 // loop_exit
                  _
              $region104: #{tpu_custom_call.1} parent=88 // pred_fallthru
                _
            $region89: #{tpu_custom_call.1} parent=84 // pred_fallthru
              _
            // Predicated region
            $region90: #{tpu_custom_call.1} parent=84 // pred_check
              _
            $region91: #{tpu_custom_call.1} parent=84 // pred_check_branch
              %627 = sbr.rel (0) target = $region93
            $region92: #{tpu_custom_call.1} parent=84 // pred_region
              %s629 = ssub.s32 16, 1
              loop: start=0, step=1, limit=1
              $region94: #{tpu_custom_call.1} parent=92 // loop_pre_header
                _
              $region95: #{tpu_custom_call.1} parent=92 // loop_header
                %s631 = sphi 0, %s635
                %p632 = scmp.ge.s32.totalorder %s631, 1
                %s636 = sphi %s550, %s550
                %s637 = sphi %s621, %s621
              $region96: #{tpu_custom_call.1} parent=92 // loop_header_branch
                %634 = sbr.rel (%p632) target = $region100
              $region97: #{tpu_custom_call.1} parent=92 // loop_body
                %v638 = vld [vmem:[%s636] sm:%s629]
                %639 = vst [vmem:[%s637] sm:%s629] %v638
                %v640 = vld [vmem:[%s636 + $0x4] sm:%s629]
                %641 = vst [vmem:[%s637 + $0x10] sm:%s629] %v640
                %v642 = vld [vmem:[%s636 + $0x8] sm:%s629]
                %643 = vst [vmem:[%s637 + $0x20] sm:%s629] %v642
                %v644 = vld [vmem:[%s636 + $0xc] sm:%s629]
                %645 = vst [vmem:[%s637 + $0x30] sm:%s629] %v644
              $region98: #{tpu_custom_call.1} parent=92 // loop_footer
                %s635 = sadd.s32 1, %s631
              $region99: #{tpu_custom_call.1} parent=92 // loop_footer_branch
                %630 = sbr.rel target = $region95
              $region100: #{tpu_custom_call.1} parent=92 // loop_exit
                _
            $region93: #{tpu_custom_call.1} parent=84 // pred_fallthru
              _
          $region85: #{tpu_custom_call.1} parent=80 // pred_fallthru
            _
          %674 = vnop
        $region81: #{tpu_custom_call.1} parent=35 // pred_fallthru
          _
        // Predicated region
        $region119: #{tpu_custom_call.1} parent=35 // pred_check
          %p675 = pneg %p207
        $region120: #{tpu_custom_call.1} parent=35 // pred_check_branch
          %677 = sbr.rel (%p675) target = $region122
        $region121: #{tpu_custom_call.1} parent=35 // pred_region
          %s678 = smul.addr %s22, 16
          %s679 = sadd.s32 %s23, %s678
          %s680 = smul.addr %s679, 4
          %s681 = scalar_lea.vmem %s6, %s680
          // Predicated region
          $region123: #{tpu_custom_call.1} parent=121 // pred_check
            _
          $region124: #{tpu_custom_call.1} parent=121 // pred_check_branch
            %683 = sbr.rel (0) target = $region126
          $region125: #{tpu_custom_call.1} parent=121 // pred_region
            // Predicated region
            $region127: #{tpu_custom_call.1} parent=125 // pred_check
              _
            $region128: #{tpu_custom_call.1} parent=125 // pred_check_branch
              %685 = sbr.rel target = $region130
            $region129: #{tpu_custom_call.1} parent=125 // pred_region
              // Predicated region
              $region142: #{tpu_custom_call.1} parent=129 // pred_check
                _
              $region143: #{tpu_custom_call.1} parent=129 // pred_check_branch
                %707 = sbr.rel (0) target = $region145
              $region144: #{tpu_custom_call.1} parent=129 // pred_region
                loop: start=0, step=1, limit=1
                $region146: #{tpu_custom_call.1} parent=144 // loop_pre_header
                  _
                $region147: #{tpu_custom_call.1} parent=144 // loop_header
                  %s709 = sphi 0, %s713
                  %p710 = scmp.ge.s32.totalorder %s709, 1
                  %s714 = sphi %s554, %s554
                  %s715 = sphi %s681, %s681
                $region148: #{tpu_custom_call.1} parent=144 // loop_header_branch
                  %712 = sbr.rel (%p710) target = $region152
                $region149: #{tpu_custom_call.1} parent=144 // loop_body
                  _
                $region150: #{tpu_custom_call.1} parent=144 // loop_footer
                  %s713 = sadd.s32 1, %s709
                $region151: #{tpu_custom_call.1} parent=144 // loop_footer_branch
                  %708 = sbr.rel target = $region147
                $region152: #{tpu_custom_call.1} parent=144 // loop_exit
                  _
                %s717 = ssub.s32 16, 1
                loop: start=0, step=1, limit=1
                $region153: #{tpu_custom_call.1} parent=144 // loop_pre_header
                  _
                $region154: #{tpu_custom_call.1} parent=144 // loop_header
                  %s719 = sphi 0, %s723
                  %p720 = scmp.ge.s32.totalorder %s719, 1
                  %s724 = sphi %s554, %s554
                  %s725 = sphi %s681, %s681
                $region155: #{tpu_custom_call.1} parent=144 // loop_header_branch
                  %722 = sbr.rel (%p720) target = $region159
                $region156: #{tpu_custom_call.1} parent=144 // loop_body
                  %v726 = vld [vmem:[%s724] sm:%s717]
                  %727 = vst [vmem:[%s725] sm:%s717] %v726
                  %v728 = vld [vmem:[%s724 + $0x4] sm:%s717]
                  %729 = vst [vmem:[%s725 + $0x10] sm:%s717] %v728
                  %v730 = vld [vmem:[%s724 + $0x8] sm:%s717]
                  %731 = vst [vmem:[%s725 + $0x20] sm:%s717] %v730
                  %v732 = vld [vmem:[%s724 + $0xc] sm:%s717]
                  %733 = vst [vmem:[%s725 + $0x30] sm:%s717] %v732
                $region157: #{tpu_custom_call.1} parent=144 // loop_footer
                  %s723 = sadd.s32 1, %s719
                $region158: #{tpu_custom_call.1} parent=144 // loop_footer_branch
                  %718 = sbr.rel target = $region154
                $region159: #{tpu_custom_call.1} parent=144 // loop_exit
                  _
              $region145: #{tpu_custom_call.1} parent=129 // pred_fallthru
                _
            $region130: #{tpu_custom_call.1} parent=125 // pred_fallthru
              _
            // Predicated region
            $region131: #{tpu_custom_call.1} parent=125 // pred_check
              _
            $region132: #{tpu_custom_call.1} parent=125 // pred_check_branch
              %687 = sbr.rel (0) target = $region134
            $region133: #{tpu_custom_call.1} parent=125 // pred_region
              %s689 = ssub.s32 16, 1
              loop: start=0, step=1, limit=1
              $region135: #{tpu_custom_call.1} parent=133 // loop_pre_header
                _
              $region136: #{tpu_custom_call.1} parent=133 // loop_header
                %s691 = sphi 0, %s695
                %p692 = scmp.ge.s32.totalorder %s691, 1
                %s696 = sphi %s554, %s554
                %s697 = sphi %s681, %s681
              $region137: #{tpu_custom_call.1} parent=133 // loop_header_branch
                %694 = sbr.rel (%p692) target = $region141
              $region138: #{tpu_custom_call.1} parent=133 // loop_body
                %v698 = vld [vmem:[%s696] sm:%s689]
                %699 = vst [vmem:[%s697] sm:%s689] %v698
                %v700 = vld [vmem:[%s696 + $0x4] sm:%s689]
                %701 = vst [vmem:[%s697 + $0x10] sm:%s689] %v700
                %v702 = vld [vmem:[%s696 + $0x8] sm:%s689]
                %703 = vst [vmem:[%s697 + $0x20] sm:%s689] %v702
                %v704 = vld [vmem:[%s696 + $0xc] sm:%s689]
                %705 = vst [vmem:[%s697 + $0x30] sm:%s689] %v704
              $region139: #{tpu_custom_call.1} parent=133 // loop_footer
                %s695 = sadd.s32 1, %s691
              $region140: #{tpu_custom_call.1} parent=133 // loop_footer_branch
                %690 = sbr.rel target = $region136
              $region141: #{tpu_custom_call.1} parent=133 // loop_exit
                _
            $region134: #{tpu_custom_call.1} parent=125 // pred_fallthru
              _
          $region126: #{tpu_custom_call.1} parent=121 // pred_fallthru
            _
          %734 = vnop
        $region122: #{tpu_custom_call.1} parent=35 // pred_fallthru
          _
      $region36: #{tpu_custom_call.1} parent=5 // pred_fallthru
        _
      %p735 = scmp.le.s32.totalorder 2, %s13
      // Predicated region
      $region160: #{tpu_custom_call.1} parent=5 // pred_check
        %p736 = pneg %p735
      $region161: #{tpu_custom_call.1} parent=5 // pred_check_branch
        %738 = sbr.rel (%p736) target = $region163
      $region162: #{tpu_custom_call.1} parent=5 // pred_region
        %s739 = ssub.s32 %s13, 2
        // Predicated region
        $region164: #{tpu_custom_call.1} parent=162 // pred_check
          %p740 = pneg %p157
        $region165: #{tpu_custom_call.1} parent=162 // pred_check_branch
          %742 = sbr.rel (%p740) target = $region167
        $region166: #{tpu_custom_call.1} parent=162 // pred_region
          %s743 = sand.u32 %s142, 1
          %s744 = sand.u32 %s142, 1
          %s745 = smul.addr %s744, 16
          %s746 = scalar_lea.vmem [#allocation2], %s745
        $region167: #{tpu_custom_call.1} parent=162 // pred_fallthru
          _
        // Predicated region
        $region168: #{tpu_custom_call.1} parent=162 // pred_check
          %p747 = pneg %p185
        $region169: #{tpu_custom_call.1} parent=162 // pred_check_branch
          %749 = sbr.rel (%p747) target = $region171
        $region170: #{tpu_custom_call.1} parent=162 // pred_region
          %s750 = sand.u32 %s170, 1
          %s751 = sand.u32 %s170, 1
          %s752 = smul.addr %s751, 16
          %s753 = scalar_lea.vmem [#allocation3], %s752
        $region171: #{tpu_custom_call.1} parent=162 // pred_fallthru
          _
        // Predicated region
        $region172: #{tpu_custom_call.1} parent=162 // pred_check
          %p754 = pneg %p213
        $region173: #{tpu_custom_call.1} parent=162 // pred_check_branch
          %756 = sbr.rel (%p754) target = $region175
        $region174: #{tpu_custom_call.1} parent=162 // pred_region
          %s757 = sand.u32 %s198, 1
          %s758 = sand.u32 %s198, 1
          %s759 = smul.addr %s758, 16
          %s760 = scalar_lea.vmem [#allocation4], %s759
        $region175: #{tpu_custom_call.1} parent=162 // pred_fallthru
          _
      $region163: #{tpu_custom_call.1} parent=5 // pred_fallthru
        _
    $region6: #{tpu_custom_call.1} parent=1 // loop_footer
      %s17 = sadd.s32 1, %s13
    $region7: #{tpu_custom_call.1} parent=1 // loop_footer_branch
      %12 = sbr.rel target = $region3
    $region8: #{tpu_custom_call.1} parent=1 // loop_exit
      _

</llo_original>
